<compile_context>
chip_gen: v7x
topology: tpu7x:2x2x1
jax: 0.10.0
libtpu: 0.0.40
codegen_flags: <defaults>
</compile_context>

<pallas_src>
import jax
import jax.numpy as jnp
from jax.experimental import pallas as pl
from jax.experimental.pallas import tpu as pltpu

B, T, N, H = 2, 8, 4, 32        # batch, seq_len, num_nodes, hidden_size
NODEVEC_DIM = 10
BN_EPS = 1e-5
DROPOUT_P = 0.1                 # identity at inference


def agrnn_kernel(x_tb_ref, x_bt_ref,
                 wih_ref, bihc_ref, whh_ref, bhn_ref, wfcg_ref,
                 supt_ref, bigwlin_ref, blin_ref, gbig_ref, s2_ref, biasc_ref,
                 out_ref):
    f32 = jnp.float32

    # -------------------- GRU branch --------------------
    # Input projection (K = N = 4): 4 VPU broadcast-FMAs, MXU kept free.
    x_tb = x_tb_ref[...]                                   # (T*B, N), t-major rows
    wih = wih_ref[...]                                     # (N, 3H)
    gx = bihc_ref[...] + x_tb[:, 0:1] * wih[0:1, :]        # (T*B, 3H)
    for j in range(1, N):
        gx = gx + x_tb[:, j:j + 1] * wih[j:j + 1, :]
    gr_all = gx[:, :H]                                     # gate slices hoisted out of the loop
    gz_all = gx[:, H:2 * H]
    gn_all = gx[:, 2 * H:]

    whh = whh_ref[...]                                     # (H, 3H) bf16, fused [r|z|n]
    bhn = bhn_ref[...]                                     # (1, H)

    # Recurrence: fully unrolled (T static), h held in vregs, one bf16 MXU
    # push per step with f32 accumulation.
    h = jnp.zeros((B, H), f32)
    hs_parts = []
    for t in range(T):
        r0 = t * B
        gh = jnp.dot(h.astype(jnp.bfloat16), whh,
                     preferred_element_type=f32)           # (B, 3H)
        r = jax.nn.sigmoid(gr_all[r0:r0 + B, :] + gh[:, :H])
        z = jax.nn.sigmoid(gz_all[r0:r0 + B, :] + gh[:, H:2 * H])
        n = jnp.tanh(gn_all[r0:r0 + B, :] + r * (gh[:, 2 * H:] + bhn))
        h = n + z * (h - n)                                # == (1-z)*n + z*h, one fewer vmul
        hs_parts.append(h)
    hs = jnp.concatenate(hs_parts, axis=0)                 # (T*B, H), t-major rows

    y1 = jnp.dot(hs, wfcg_ref[...], preferred_element_type=f32)   # (T*B, N), BN1 folded

    # -------------------- AGCN branch (fully batched) --------------------
    # support contraction (K = N = 4) on the VPU, b-major rows.
    x_bt = x_bt_ref[...]                                   # (B*T, N), b-major rows
    supt = supt_ref[...]                                   # (N, N) = support.T
    u = x_bt[:, 0:1] * supt[0:1, :]
    for j in range(1, N):
        u = u + x_bt[:, j:j + 1] * supt[j:j + 1, :]        # (B*T, N)

    # Block-diagonal kron weights make both linears plain 2-D matmuls whose
    # result rows already match the output row order -> no transposes at all.
    h1 = jnp.maximum(
        jnp.dot(bigwlin_ref[...], u, preferred_element_type=f32) + blin_ref[...],
        0.0)                                               # (B*H, N)
    z2 = jnp.dot(gbig_ref[...], h1, preferred_element_type=f32)   # (T*B, N), t-major

    # Dropout == identity at inference.  Single full-ref store, lane-dense slab.
    out_ref[...] = y1 + z2 * s2_ref[...] + biasc_ref[...]


def agrnn_forward(x, kernel_args):
    # Layout plumbing lives in the wrapper (free), not in the kernel.
    x_tb = jnp.transpose(x, (1, 0, 2)).reshape(T * B, N)   # t-major rows for the GRU
    x_bt = x.reshape(B * T, N)                             # b-major rows for the AGCN
    n_in = 2 + len(kernel_args)
    fn = pl.pallas_call(
        agrnn_kernel,
        out_shape=jax.ShapeDtypeStruct((T * B, N), jnp.float32),
        in_specs=[pl.BlockSpec(memory_space=pltpu.MemorySpace.VMEM)] * n_in,
        out_specs=pl.BlockSpec(memory_space=pltpu.MemorySpace.VMEM),
        cost_estimate=pl.CostEstimate(flops=150_000, transcendentals=1_536,
                                      bytes_accessed=20_000),
    )
    out_tb = fn(x_tb, x_bt, *kernel_args)
    return jnp.transpose(out_tb.reshape(T, B, N), (1, 0, 2))   # back to (B, T, N)


def init_params(key):
    ks = jax.random.split(key, 15)
    s = 0.3
    nodevec = jax.random.normal(ks[0], (N, NODEVEC_DIM), jnp.float32)
    w_ih = s * jax.random.normal(ks[1], (3 * H, N), jnp.float32)
    w_hh = s * jax.random.normal(ks[2], (3 * H, H), jnp.float32)
    b_ih = s * jax.random.normal(ks[3], (3 * H,), jnp.float32)
    b_hh = s * jax.random.normal(ks[4], (3 * H,), jnp.float32)
    gru_fc_w = s * jax.random.normal(ks[5], (N, H), jnp.float32)
    gru_fc_b = s * jax.random.normal(ks[6], (N,), jnp.float32)
    bn1_g = 1.0 + 0.1 * jax.random.normal(ks[7], (N,), jnp.float32)
    bn1_b = 0.1 * jax.random.normal(ks[8], (N,), jnp.float32)
    lin_w = s * jax.random.normal(ks[9], (H, T), jnp.float32)
    lin_b = s * jax.random.normal(ks[10], (H,), jnp.float32)
    fc2_w = s * jax.random.normal(ks[11], (T, H), jnp.float32)
    fc2_b = s * jax.random.normal(ks[12], (T,), jnp.float32)
    bn2_g = 1.0 + 0.1 * jax.random.normal(ks[13], (N,), jnp.float32)
    bn2_b = 0.1 * jax.random.normal(ks[14], (N,), jnp.float32)
    return (nodevec, w_ih, w_hh, b_ih, b_hh, gru_fc_w, gru_fc_b, bn1_g, bn1_b,
            lin_w, lin_b, fc2_w, fc2_b, bn2_g, bn2_b)


def pack_kernel_args(p):
    """Parameter-only precomputation (host/XLA, once per weight set)."""
    (nodevec, w_ih, w_hh, b_ih, b_hh, gru_fc_w, gru_fc_b, bn1_g, bn1_b,
     lin_w, lin_b, fc2_w, fc2_b, bn2_g, bn2_b) = p
    inv = 1.0 / jnp.sqrt(1.0 + BN_EPS)               # eval BN: running mean=0, var=1

    # GRU input projection; fold b_hh into b_ih for r/z (b_hn stays inside r*()).
    wih_T = w_ih.T                                                    # (N, 3H)
    bihc = jnp.concatenate([b_ih[:2 * H] + b_hh[:2 * H], b_ih[2 * H:]]).reshape(1, 3 * H)
    whh_f = w_hh.T.astype(jnp.bfloat16)                               # (H, 3H) fused [r|z|n]
    bhn = b_hh[2 * H:].reshape(1, H)

    # GRU fc with BatchNorm1d eval affine folded; bias moved into biasc.
    s1 = bn1_g * inv
    wfcg = (gru_fc_w * s1[:, None]).T                                 # (H, N)
    bfcg = gru_fc_b * s1 + bn1_b                                      # (N,)

    # Adaptive adjacency -> normalized self-loop Laplacian (parameter-only).
    adp = jax.nn.sigmoid(jax.nn.relu(nodevec @ nodevec.T))
    mat = adp + jnp.eye(N, dtype=jnp.float32)
    d = jnp.sum(mat, axis=1) ** -0.5
    d = jnp.where(jnp.isinf(d), 0.0, d)
    dmat = jnp.diag(d)
    support = (mat @ dmat).T @ dmat
    supt = support.T                                                  # (N, N): u = x @ supt

    # Block-diagonal AGCN weights (kron) so the branch is one batched pipeline:
    #   bigwlin[(b,h),(b',t)] = delta_{bb'} * lin_w[h,t]        -> rows (b,h), cols (b,t)
    #   gbig   [(t,b),(c,h) ] = delta_{bc}  * fc2_w[t,h]        -> rows (t,b) == output order
    bigwlin = jnp.kron(jnp.eye(B, dtype=jnp.float32), lin_w)          # (B*H, B*T)
    blin_col = jnp.tile(lin_b, B).reshape(B * H, 1)                   # (B*H, 1)
    gbig = (fc2_w[:, None, None, :] *
            jnp.eye(B, dtype=jnp.float32)[None, :, :, None]).reshape(T * B, B * H)

    # BN2 eval affine + all remaining biases combined into one (T*B, N) slab.
    s2 = bn2_g * inv
    bias2 = fc2_b[:, None] * s2[None, :] + bn2_b[None, :]             # (T, N)
    biasc = jnp.repeat(bfcg[None, :] + bias2, B, axis=0)              # (T*B, N), t-major

    return (wih_T, bihc, whh_f, bhn, wfcg,
            supt, bigwlin, blin_col, gbig, s2.reshape(1, N), biasc)


def reference_forward(x, p):
    """Plain-JAX f32 mirror of the PyTorch forward (eval mode)."""
    (nodevec, w_ih, w_hh, b_ih, b_hh, gru_fc_w, gru_fc_b, bn1_g, bn1_b,
     lin_w, lin_b, fc2_w, fc2_b, bn2_g, bn2_b) = p
    inv = 1.0 / jnp.sqrt(1.0 + BN_EPS)
    # GRU branch
    h = jnp.zeros((B, H), jnp.float32)
    hs = []
    for t in range(T):
        xt = x[:, t, :]
        gx = xt @ w_ih.T + b_ih
        gh = h @ w_hh.T + b_hh
        r = jax.nn.sigmoid(gx[:, :H] + gh[:, :H])
        z = jax.nn.sigmoid(gx[:, H:2 * H] + gh[:, H:2 * H])
        n = jnp.tanh(gx[:, 2 * H:] + r * gh[:, 2 * H:])
        h = (1.0 - z) * n + z * h
        hs.append(h)
    hs = jnp.stack(hs, axis=1)                       # (B, T, H)
    y1 = hs @ gru_fc_w.T + gru_fc_b
    y1 = y1 * inv * bn1_g + bn1_b
    # AGCN branch on x.permute(0, 2, 1)
    xt_ = jnp.transpose(x, (0, 2, 1))                # (B, N, T)
    adp = jax.nn.sigmoid(jnp.maximum(nodevec @ nodevec.T, 0.0))
    mat = adp + jnp.eye(N, dtype=jnp.float32)
    d = jnp.sum(mat, axis=1) ** -0.5
    d = jnp.where(jnp.isinf(d), 0.0, d)
    dmat = jnp.diag(d)
    support = (mat @ dmat).T @ dmat
    g = jnp.einsum('ij,bjk->bik', support, xt_)
    h1 = jax.nn.relu(g @ lin_w.T + lin_b)
    y2 = h1 @ fc2_w.T + fc2_b
    y2 = y2 * inv * bn2_g[None, :, None] + bn2_b[None, :, None]
    y2 = jnp.transpose(y2, (0, 2, 1))
    return y1 + y2                                   # dropout == identity (eval)


if __name__ == "__main__":
    key = jax.random.PRNGKey(0)
    pkey, xkey = jax.random.split(key)
    params = init_params(pkey)
    x = jax.random.normal(xkey, (B, T, N), jnp.float32)

    out = agrnn_forward(x, pack_kernel_args(params))
    out = jax.block_until_ready(out)

    ref = reference_forward(x, params)
    assert out.shape == (B, T, N)
    assert bool(jnp.all(jnp.isfinite(out)))
    # Recurrent matmuls run in bf16 (f32 accumulate) per the perf review, so
    # compare against the f32 reference with a bf16-appropriate tolerance
    # (typical max|diff| ~1e-2 at these weight scales).
    max_err = float(jnp.max(jnp.abs(out - ref)))
    assert max_err < 1e-1, f"mismatch vs JAX reference: {max_err}"
    print("KERNEL_OK")
</pallas_src>

<mosaic_0001>
module attributes {stable_mosaic.version = 11 : i64} {
  func.func @agrnn_kernel(%arg0: memref<16x4xf32, #tpu.memory_space<vmem>>, %arg1: memref<16x4xf32, #tpu.memory_space<vmem>>, %arg2: memref<4x96xf32, #tpu.memory_space<vmem>>, %arg3: memref<1x96xf32, #tpu.memory_space<vmem>>, %arg4: memref<32x96xbf16, #tpu.memory_space<vmem>>, %arg5: memref<1x32xf32, #tpu.memory_space<vmem>>, %arg6: memref<32x4xf32, #tpu.memory_space<vmem>>, %arg7: memref<4x4xf32, #tpu.memory_space<vmem>>, %arg8: memref<64x16xf32, #tpu.memory_space<vmem>>, %arg9: memref<64x1xf32, #tpu.memory_space<vmem>>, %arg10: memref<16x64xf32, #tpu.memory_space<vmem>>, %arg11: memref<1x4xf32, #tpu.memory_space<vmem>>, %arg12: memref<16x4xf32, #tpu.memory_space<vmem>>, %arg13: memref<16x4xf32, #tpu.memory_space<vmem>>) attributes {dimension_semantics = [], scalar_prefetch = 0 : i64, scratch_operands = 0 : i64, tpu.core_type = #tpu.core_type<tc>} {
    %c0 = arith.constant 0 : index
    %c0_0 = arith.constant 0 : index
    %0 = vector.load %arg0[%c0, %c0_0] : memref<16x4xf32, #tpu.memory_space<vmem>>, vector<16x4xf32>
    %c0_1 = arith.constant 0 : index
    %c0_2 = arith.constant 0 : index
    %1 = vector.load %arg2[%c0_1, %c0_2] : memref<4x96xf32, #tpu.memory_space<vmem>>, vector<4x96xf32>
    %c0_3 = arith.constant 0 : index
    %c0_4 = arith.constant 0 : index
    %2 = vector.load %arg3[%c0_3, %c0_4] : memref<1x96xf32, #tpu.memory_space<vmem>>, vector<1x96xf32>
    %3 = vector.extract_strided_slice %0 {offsets = [0, 0], sizes = [16, 1], strides = [1, 1]} : vector<16x4xf32> to vector<16x1xf32>
    %4 = vector.extract_strided_slice %1 {offsets = [0, 0], sizes = [1, 96], strides = [1, 1]} : vector<4x96xf32> to vector<1x96xf32>
    %5 = vector.broadcast %3 : vector<16x1xf32> to vector<16x96xf32>
    %6 = vector.broadcast %4 : vector<1x96xf32> to vector<16x96xf32>
    %7 = arith.mulf %5, %6 : vector<16x96xf32>
    %8 = vector.broadcast %2 : vector<1x96xf32> to vector<16x96xf32>
    %9 = arith.addf %8, %7 : vector<16x96xf32>
    %10 = vector.extract_strided_slice %0 {offsets = [0, 1], sizes = [16, 1], strides = [1, 1]} : vector<16x4xf32> to vector<16x1xf32>
    %11 = vector.extract_strided_slice %1 {offsets = [1, 0], sizes = [1, 96], strides = [1, 1]} : vector<4x96xf32> to vector<1x96xf32>
    %12 = vector.broadcast %10 : vector<16x1xf32> to vector<16x96xf32>
    %13 = vector.broadcast %11 : vector<1x96xf32> to vector<16x96xf32>
    %14 = arith.mulf %12, %13 : vector<16x96xf32>
    %15 = arith.addf %9, %14 : vector<16x96xf32>
    %16 = vector.extract_strided_slice %0 {offsets = [0, 2], sizes = [16, 1], strides = [1, 1]} : vector<16x4xf32> to vector<16x1xf32>
    %17 = vector.extract_strided_slice %1 {offsets = [2, 0], sizes = [1, 96], strides = [1, 1]} : vector<4x96xf32> to vector<1x96xf32>
    %18 = vector.broadcast %16 : vector<16x1xf32> to vector<16x96xf32>
    %19 = vector.broadcast %17 : vector<1x96xf32> to vector<16x96xf32>
    %20 = arith.mulf %18, %19 : vector<16x96xf32>
    %21 = arith.addf %15, %20 : vector<16x96xf32>
    %22 = vector.extract_strided_slice %0 {offsets = [0, 3], sizes = [16, 1], strides = [1, 1]} : vector<16x4xf32> to vector<16x1xf32>
    %23 = vector.extract_strided_slice %1 {offsets = [3, 0], sizes = [1, 96], strides = [1, 1]} : vector<4x96xf32> to vector<1x96xf32>
    %24 = vector.broadcast %22 : vector<16x1xf32> to vector<16x96xf32>
    %25 = vector.broadcast %23 : vector<1x96xf32> to vector<16x96xf32>
    %26 = arith.mulf %24, %25 : vector<16x96xf32>
    %27 = arith.addf %21, %26 : vector<16x96xf32>
    %28 = vector.extract_strided_slice %27 {offsets = [0, 0], sizes = [16, 32], strides = [1, 1]} : vector<16x96xf32> to vector<16x32xf32>
    %29 = vector.extract_strided_slice %27 {offsets = [0, 32], sizes = [16, 32], strides = [1, 1]} : vector<16x96xf32> to vector<16x32xf32>
    %30 = vector.extract_strided_slice %27 {offsets = [0, 64], sizes = [16, 32], strides = [1, 1]} : vector<16x96xf32> to vector<16x32xf32>
    %c0_5 = arith.constant 0 : index
    %c0_6 = arith.constant 0 : index
    %31 = vector.load %arg4[%c0_5, %c0_6] : memref<32x96xbf16, #tpu.memory_space<vmem>>, vector<32x96xbf16>
    %c0_7 = arith.constant 0 : index
    %c0_8 = arith.constant 0 : index
    %32 = vector.load %arg5[%c0_7, %c0_8] : memref<1x32xf32, #tpu.memory_space<vmem>>, vector<1x32xf32>
    %cst = arith.constant 0.000000e+00 : f32
    %33 = vector.broadcast %cst : f32 to vector<2x32xf32>
    %34 = arith.truncf %33 : vector<2x32xf32> to vector<2x32xbf16>
    %cst_9 = arith.constant dense<0.000000e+00> : vector<2x96xf32>
    %35 = tpu.matmul %34, %31, %cst_9 {dimension_numbers = #tpu.dot_dimension_numbers<[1], [0], [0], [1], [0, 0, 1, 1], [], []>} : vector<2x32xbf16>, vector<32x96xbf16>, vector<2x96xf32> -> vector<2x96xf32>
    %36 = vector.extract_strided_slice %28 {offsets = [0, 0], sizes = [2, 32], strides = [1, 1]} : vector<16x32xf32> to vector<2x32xf32>
    %37 = vector.extract_strided_slice %35 {offsets = [0, 0], sizes = [2, 32], strides = [1, 1]} : vector<2x96xf32> to vector<2x32xf32>
    %38 = arith.addf %36, %37 : vector<2x32xf32>
    %39 = arith.negf %38 : vector<2x32xf32>
    %40 = math.exp %39 : vector<2x32xf32>
    %cst_10 = arith.constant 1.000000e+00 : f32
    %41 = vector.broadcast %cst_10 : f32 to vector<2x32xf32>
    %42 = arith.addf %41, %40 : vector<2x32xf32>
    %43 = arith.divf %41, %42 : vector<2x32xf32>
    %44 = vector.extract_strided_slice %29 {offsets = [0, 0], sizes = [2, 32], strides = [1, 1]} : vector<16x32xf32> to vector<2x32xf32>
    %45 = vector.extract_strided_slice %35 {offsets = [0, 32], sizes = [2, 32], strides = [1, 1]} : vector<2x96xf32> to vector<2x32xf32>
    %46 = arith.addf %44, %45 : vector<2x32xf32>
    %47 = arith.negf %46 : vector<2x32xf32>
    %48 = math.exp %47 : vector<2x32xf32>
    %cst_11 = arith.constant 1.000000e+00 : f32
    %49 = vector.broadcast %cst_11 : f32 to vector<2x32xf32>
    %50 = arith.addf %49, %48 : vector<2x32xf32>
    %51 = arith.divf %49, %50 : vector<2x32xf32>
    %52 = vector.extract_strided_slice %30 {offsets = [0, 0], sizes = [2, 32], strides = [1, 1]} : vector<16x32xf32> to vector<2x32xf32>
    %53 = vector.extract_strided_slice %35 {offsets = [0, 64], sizes = [2, 32], strides = [1, 1]} : vector<2x96xf32> to vector<2x32xf32>
    %54 = vector.broadcast %32 : vector<1x32xf32> to vector<2x32xf32>
    %55 = arith.addf %53, %54 : vector<2x32xf32>
    %56 = arith.mulf %43, %55 : vector<2x32xf32>
    %57 = arith.addf %52, %56 : vector<2x32xf32>
    %58 = math.tanh %57 : vector<2x32xf32>
    %59 = arith.subf %33, %58 : vector<2x32xf32>
    %60 = arith.mulf %51, %59 : vector<2x32xf32>
    %61 = arith.addf %58, %60 : vector<2x32xf32>
    %62 = arith.truncf %61 : vector<2x32xf32> to vector<2x32xbf16>
    %cst_12 = arith.constant dense<0.000000e+00> : vector<2x96xf32>
    %63 = tpu.matmul %62, %31, %cst_12 {dimension_numbers = #tpu.dot_dimension_numbers<[1], [0], [0], [1], [0, 0, 1, 1], [], []>} : vector<2x32xbf16>, vector<32x96xbf16>, vector<2x96xf32> -> vector<2x96xf32>
    %64 = vector.extract_strided_slice %28 {offsets = [2, 0], sizes = [2, 32], strides = [1, 1]} : vector<16x32xf32> to vector<2x32xf32>
    %65 = vector.extract_strided_slice %63 {offsets = [0, 0], sizes = [2, 32], strides = [1, 1]} : vector<2x96xf32> to vector<2x32xf32>
    %66 = arith.addf %64, %65 : vector<2x32xf32>
    %67 = arith.negf %66 : vector<2x32xf32>
    %68 = math.exp %67 : vector<2x32xf32>
    %cst_13 = arith.constant 1.000000e+00 : f32
    %69 = vector.broadcast %cst_13 : f32 to vector<2x32xf32>
    %70 = arith.addf %69, %68 : vector<2x32xf32>
    %71 = arith.divf %69, %70 : vector<2x32xf32>
    %72 = vector.extract_strided_slice %29 {offsets = [2, 0], sizes = [2, 32], strides = [1, 1]} : vector<16x32xf32> to vector<2x32xf32>
    %73 = vector.extract_strided_slice %63 {offsets = [0, 32], sizes = [2, 32], strides = [1, 1]} : vector<2x96xf32> to vector<2x32xf32>
    %74 = arith.addf %72, %73 : vector<2x32xf32>
    %75 = arith.negf %74 : vector<2x32xf32>
    %76 = math.exp %75 : vector<2x32xf32>
    %cst_14 = arith.constant 1.000000e+00 : f32
    %77 = vector.broadcast %cst_14 : f32 to vector<2x32xf32>
    %78 = arith.addf %77, %76 : vector<2x32xf32>
    %79 = arith.divf %77, %78 : vector<2x32xf32>
    %80 = vector.extract_strided_slice %30 {offsets = [2, 0], sizes = [2, 32], strides = [1, 1]} : vector<16x32xf32> to vector<2x32xf32>
    %81 = vector.extract_strided_slice %63 {offsets = [0, 64], sizes = [2, 32], strides = [1, 1]} : vector<2x96xf32> to vector<2x32xf32>
    %82 = vector.broadcast %32 : vector<1x32xf32> to vector<2x32xf32>
    %83 = arith.addf %81, %82 : vector<2x32xf32>
    %84 = arith.mulf %71, %83 : vector<2x32xf32>
    %85 = arith.addf %80, %84 : vector<2x32xf32>
    %86 = math.tanh %85 : vector<2x32xf32>
    %87 = arith.subf %61, %86 : vector<2x32xf32>
    %88 = arith.mulf %79, %87 : vector<2x32xf32>
    %89 = arith.addf %86, %88 : vector<2x32xf32>
    %90 = arith.truncf %89 : vector<2x32xf32> to vector<2x32xbf16>
    %cst_15 = arith.constant dense<0.000000e+00> : vector<2x96xf32>
    %91 = tpu.matmul %90, %31, %cst_15 {dimension_numbers = #tpu.dot_dimension_numbers<[1], [0], [0], [1], [0, 0, 1, 1], [], []>} : vector<2x32xbf16>, vector<32x96xbf16>, vector<2x96xf32> -> vector<2x96xf32>
    %92 = vector.extract_strided_slice %28 {offsets = [4, 0], sizes = [2, 32], strides = [1, 1]} : vector<16x32xf32> to vector<2x32xf32>
    %93 = vector.extract_strided_slice %91 {offsets = [0, 0], sizes = [2, 32], strides = [1, 1]} : vector<2x96xf32> to vector<2x32xf32>
    %94 = arith.addf %92, %93 : vector<2x32xf32>
    %95 = arith.negf %94 : vector<2x32xf32>
    %96 = math.exp %95 : vector<2x32xf32>
    %cst_16 = arith.constant 1.000000e+00 : f32
    %97 = vector.broadcast %cst_16 : f32 to vector<2x32xf32>
    %98 = arith.addf %97, %96 : vector<2x32xf32>
    %99 = arith.divf %97, %98 : vector<2x32xf32>
    %100 = vector.extract_strided_slice %29 {offsets = [4, 0], sizes = [2, 32], strides = [1, 1]} : vector<16x32xf32> to vector<2x32xf32>
    %101 = vector.extract_strided_slice %91 {offsets = [0, 32], sizes = [2, 32], strides = [1, 1]} : vector<2x96xf32> to vector<2x32xf32>
    %102 = arith.addf %100, %101 : vector<2x32xf32>
    %103 = arith.negf %102 : vector<2x32xf32>
    %104 = math.exp %103 : vector<2x32xf32>
    %cst_17 = arith.constant 1.000000e+00 : f32
    %105 = vector.broadcast %cst_17 : f32 to vector<2x32xf32>
    %106 = arith.addf %105, %104 : vector<2x32xf32>
    %107 = arith.divf %105, %106 : vector<2x32xf32>
    %108 = vector.extract_strided_slice %30 {offsets = [4, 0], sizes = [2, 32], strides = [1, 1]} : vector<16x32xf32> to vector<2x32xf32>
    %109 = vector.extract_strided_slice %91 {offsets = [0, 64], sizes = [2, 32], strides = [1, 1]} : vector<2x96xf32> to vector<2x32xf32>
    %110 = vector.broadcast %32 : vector<1x32xf32> to vector<2x32xf32>
    %111 = arith.addf %109, %110 : vector<2x32xf32>
    %112 = arith.mulf %99, %111 : vector<2x32xf32>
    %113 = arith.addf %108, %112 : vector<2x32xf32>
    %114 = math.tanh %113 : vector<2x32xf32>
    %115 = arith.subf %89, %114 : vector<2x32xf32>
    %116 = arith.mulf %107, %115 : vector<2x32xf32>
    %117 = arith.addf %114, %116 : vector<2x32xf32>
    %118 = arith.truncf %117 : vector<2x32xf32> to vector<2x32xbf16>
    %cst_18 = arith.constant dense<0.000000e+00> : vector<2x96xf32>
    %119 = tpu.matmul %118, %31, %cst_18 {dimension_numbers = #tpu.dot_dimension_numbers<[1], [0], [0], [1], [0, 0, 1, 1], [], []>} : vector<2x32xbf16>, vector<32x96xbf16>, vector<2x96xf32> -> vector<2x96xf32>
    %120 = vector.extract_strided_slice %28 {offsets = [6, 0], sizes = [2, 32], strides = [1, 1]} : vector<16x32xf32> to vector<2x32xf32>
    %121 = vector.extract_strided_slice %119 {offsets = [0, 0], sizes = [2, 32], strides = [1, 1]} : vector<2x96xf32> to vector<2x32xf32>
    %122 = arith.addf %120, %121 : vector<2x32xf32>
    %123 = arith.negf %122 : vector<2x32xf32>
    %124 = math.exp %123 : vector<2x32xf32>
    %cst_19 = arith.constant 1.000000e+00 : f32
    %125 = vector.broadcast %cst_19 : f32 to vector<2x32xf32>
    %126 = arith.addf %125, %124 : vector<2x32xf32>
    %127 = arith.divf %125, %126 : vector<2x32xf32>
    %128 = vector.extract_strided_slice %29 {offsets = [6, 0], sizes = [2, 32], strides = [1, 1]} : vector<16x32xf32> to vector<2x32xf32>
    %129 = vector.extract_strided_slice %119 {offsets = [0, 32], sizes = [2, 32], strides = [1, 1]} : vector<2x96xf32> to vector<2x32xf32>
    %130 = arith.addf %128, %129 : vector<2x32xf32>
    %131 = arith.negf %130 : vector<2x32xf32>
    %132 = math.exp %131 : vector<2x32xf32>
    %cst_20 = arith.constant 1.000000e+00 : f32
    %133 = vector.broadcast %cst_20 : f32 to vector<2x32xf32>
    %134 = arith.addf %133, %132 : vector<2x32xf32>
    %135 = arith.divf %133, %134 : vector<2x32xf32>
    %136 = vector.extract_strided_slice %30 {offsets = [6, 0], sizes = [2, 32], strides = [1, 1]} : vector<16x32xf32> to vector<2x32xf32>
    %137 = vector.extract_strided_slice %119 {offsets = [0, 64], sizes = [2, 32], strides = [1, 1]} : vector<2x96xf32> to vector<2x32xf32>
    %138 = vector.broadcast %32 : vector<1x32xf32> to vector<2x32xf32>
    %139 = arith.addf %137, %138 : vector<2x32xf32>
    %140 = arith.mulf %127, %139 : vector<2x32xf32>
    %141 = arith.addf %136, %140 : vector<2x32xf32>
    %142 = math.tanh %141 : vector<2x32xf32>
    %143 = arith.subf %117, %142 : vector<2x32xf32>
    %144 = arith.mulf %135, %143 : vector<2x32xf32>
    %145 = arith.addf %142, %144 : vector<2x32xf32>
    %146 = arith.truncf %145 : vector<2x32xf32> to vector<2x32xbf16>
    %cst_21 = arith.constant dense<0.000000e+00> : vector<2x96xf32>
    %147 = tpu.matmul %146, %31, %cst_21 {dimension_numbers = #tpu.dot_dimension_numbers<[1], [0], [0], [1], [0, 0, 1, 1], [], []>} : vector<2x32xbf16>, vector<32x96xbf16>, vector<2x96xf32> -> vector<2x96xf32>
    %148 = vector.extract_strided_slice %28 {offsets = [8, 0], sizes = [2, 32], strides = [1, 1]} : vector<16x32xf32> to vector<2x32xf32>
    %149 = vector.extract_strided_slice %147 {offsets = [0, 0], sizes = [2, 32], strides = [1, 1]} : vector<2x96xf32> to vector<2x32xf32>
    %150 = arith.addf %148, %149 : vector<2x32xf32>
    %151 = arith.negf %150 : vector<2x32xf32>
    %152 = math.exp %151 : vector<2x32xf32>
    %cst_22 = arith.constant 1.000000e+00 : f32
    %153 = vector.broadcast %cst_22 : f32 to vector<2x32xf32>
    %154 = arith.addf %153, %152 : vector<2x32xf32>
    %155 = arith.divf %153, %154 : vector<2x32xf32>
    %156 = vector.extract_strided_slice %29 {offsets = [8, 0], sizes = [2, 32], strides = [1, 1]} : vector<16x32xf32> to vector<2x32xf32>
    %157 = vector.extract_strided_slice %147 {offsets = [0, 32], sizes = [2, 32], strides = [1, 1]} : vector<2x96xf32> to vector<2x32xf32>
    %158 = arith.addf %156, %157 : vector<2x32xf32>
    %159 = arith.negf %158 : vector<2x32xf32>
    %160 = math.exp %159 : vector<2x32xf32>
    %cst_23 = arith.constant 1.000000e+00 : f32
    %161 = vector.broadcast %cst_23 : f32 to vector<2x32xf32>
    %162 = arith.addf %161, %160 : vector<2x32xf32>
    %163 = arith.divf %161, %162 : vector<2x32xf32>
    %164 = vector.extract_strided_slice %30 {offsets = [8, 0], sizes = [2, 32], strides = [1, 1]} : vector<16x32xf32> to vector<2x32xf32>
    %165 = vector.extract_strided_slice %147 {offsets = [0, 64], sizes = [2, 32], strides = [1, 1]} : vector<2x96xf32> to vector<2x32xf32>
    %166 = vector.broadcast %32 : vector<1x32xf32> to vector<2x32xf32>
    %167 = arith.addf %165, %166 : vector<2x32xf32>
    %168 = arith.mulf %155, %167 : vector<2x32xf32>
    %169 = arith.addf %164, %168 : vector<2x32xf32>
    %170 = math.tanh %169 : vector<2x32xf32>
    %171 = arith.subf %145, %170 : vector<2x32xf32>
    %172 = arith.mulf %163, %171 : vector<2x32xf32>
    %173 = arith.addf %170, %172 : vector<2x32xf32>
    %174 = arith.truncf %173 : vector<2x32xf32> to vector<2x32xbf16>
    %cst_24 = arith.constant dense<0.000000e+00> : vector<2x96xf32>
    %175 = tpu.matmul %174, %31, %cst_24 {dimension_numbers = #tpu.dot_dimension_numbers<[1], [0], [0], [1], [0, 0, 1, 1], [], []>} : vector<2x32xbf16>, vector<32x96xbf16>, vector<2x96xf32> -> vector<2x96xf32>
    %176 = vector.extract_strided_slice %28 {offsets = [10, 0], sizes = [2, 32], strides = [1, 1]} : vector<16x32xf32> to vector<2x32xf32>
    %177 = vector.extract_strided_slice %175 {offsets = [0, 0], sizes = [2, 32], strides = [1, 1]} : vector<2x96xf32> to vector<2x32xf32>
    %178 = arith.addf %176, %177 : vector<2x32xf32>
    %179 = arith.negf %178 : vector<2x32xf32>
    %180 = math.exp %179 : vector<2x32xf32>
    %cst_25 = arith.constant 1.000000e+00 : f32
    %181 = vector.broadcast %cst_25 : f32 to vector<2x32xf32>
    %182 = arith.addf %181, %180 : vector<2x32xf32>
    %183 = arith.divf %181, %182 : vector<2x32xf32>
    %184 = vector.extract_strided_slice %29 {offsets = [10, 0], sizes = [2, 32], strides = [1, 1]} : vector<16x32xf32> to vector<2x32xf32>
    %185 = vector.extract_strided_slice %175 {offsets = [0, 32], sizes = [2, 32], strides = [1, 1]} : vector<2x96xf32> to vector<2x32xf32>
    %186 = arith.addf %184, %185 : vector<2x32xf32>
    %187 = arith.negf %186 : vector<2x32xf32>
    %188 = math.exp %187 : vector<2x32xf32>
    %cst_26 = arith.constant 1.000000e+00 : f32
    %189 = vector.broadcast %cst_26 : f32 to vector<2x32xf32>
    %190 = arith.addf %189, %188 : vector<2x32xf32>
    %191 = arith.divf %189, %190 : vector<2x32xf32>
    %192 = vector.extract_strided_slice %30 {offsets = [10, 0], sizes = [2, 32], strides = [1, 1]} : vector<16x32xf32> to vector<2x32xf32>
    %193 = vector.extract_strided_slice %175 {offsets = [0, 64], sizes = [2, 32], strides = [1, 1]} : vector<2x96xf32> to vector<2x32xf32>
    %194 = vector.broadcast %32 : vector<1x32xf32> to vector<2x32xf32>
    %195 = arith.addf %193, %194 : vector<2x32xf32>
    %196 = arith.mulf %183, %195 : vector<2x32xf32>
    %197 = arith.addf %192, %196 : vector<2x32xf32>
    %198 = math.tanh %197 : vector<2x32xf32>
    %199 = arith.subf %173, %198 : vector<2x32xf32>
    %200 = arith.mulf %191, %199 : vector<2x32xf32>
    %201 = arith.addf %198, %200 : vector<2x32xf32>
    %202 = arith.truncf %201 : vector<2x32xf32> to vector<2x32xbf16>
    %cst_27 = arith.constant dense<0.000000e+00> : vector<2x96xf32>
    %203 = tpu.matmul %202, %31, %cst_27 {dimension_numbers = #tpu.dot_dimension_numbers<[1], [0], [0], [1], [0, 0, 1, 1], [], []>} : vector<2x32xbf16>, vector<32x96xbf16>, vector<2x96xf32> -> vector<2x96xf32>
    %204 = vector.extract_strided_slice %28 {offsets = [12, 0], sizes = [2, 32], strides = [1, 1]} : vector<16x32xf32> to vector<2x32xf32>
    %205 = vector.extract_strided_slice %203 {offsets = [0, 0], sizes = [2, 32], strides = [1, 1]} : vector<2x96xf32> to vector<2x32xf32>
    %206 = arith.addf %204, %205 : vector<2x32xf32>
    %207 = arith.negf %206 : vector<2x32xf32>
    %208 = math.exp %207 : vector<2x32xf32>
    %cst_28 = arith.constant 1.000000e+00 : f32
    %209 = vector.broadcast %cst_28 : f32 to vector<2x32xf32>
    %210 = arith.addf %209, %208 : vector<2x32xf32>
    %211 = arith.divf %209, %210 : vector<2x32xf32>
    %212 = vector.extract_strided_slice %29 {offsets = [12, 0], sizes = [2, 32], strides = [1, 1]} : vector<16x32xf32> to vector<2x32xf32>
    %213 = vector.extract_strided_slice %203 {offsets = [0, 32], sizes = [2, 32], strides = [1, 1]} : vector<2x96xf32> to vector<2x32xf32>
    %214 = arith.addf %212, %213 : vector<2x32xf32>
    %215 = arith.negf %214 : vector<2x32xf32>
    %216 = math.exp %215 : vector<2x32xf32>
    %cst_29 = arith.constant 1.000000e+00 : f32
    %217 = vector.broadcast %cst_29 : f32 to vector<2x32xf32>
    %218 = arith.addf %217, %216 : vector<2x32xf32>
    %219 = arith.divf %217, %218 : vector<2x32xf32>
    %220 = vector.extract_strided_slice %30 {offsets = [12, 0], sizes = [2, 32], strides = [1, 1]} : vector<16x32xf32> to vector<2x32xf32>
    %221 = vector.extract_strided_slice %203 {offsets = [0, 64], sizes = [2, 32], strides = [1, 1]} : vector<2x96xf32> to vector<2x32xf32>
    %222 = vector.broadcast %32 : vector<1x32xf32> to vector<2x32xf32>
    %223 = arith.addf %221, %222 : vector<2x32xf32>
    %224 = arith.mulf %211, %223 : vector<2x32xf32>
    %225 = arith.addf %220, %224 : vector<2x32xf32>
    %226 = math.tanh %225 : vector<2x32xf32>
    %227 = arith.subf %201, %226 : vector<2x32xf32>
    %228 = arith.mulf %219, %227 : vector<2x32xf32>
    %229 = arith.addf %226, %228 : vector<2x32xf32>
    %230 = arith.truncf %229 : vector<2x32xf32> to vector<2x32xbf16>
    %cst_30 = arith.constant dense<0.000000e+00> : vector<2x96xf32>
    %231 = tpu.matmul %230, %31, %cst_30 {dimension_numbers = #tpu.dot_dimension_numbers<[1], [0], [0], [1], [0, 0, 1, 1], [], []>} : vector<2x32xbf16>, vector<32x96xbf16>, vector<2x96xf32> -> vector<2x96xf32>
    %232 = vector.extract_strided_slice %28 {offsets = [14, 0], sizes = [2, 32], strides = [1, 1]} : vector<16x32xf32> to vector<2x32xf32>
    %233 = vector.extract_strided_slice %231 {offsets = [0, 0], sizes = [2, 32], strides = [1, 1]} : vector<2x96xf32> to vector<2x32xf32>
    %234 = arith.addf %232, %233 : vector<2x32xf32>
    %235 = arith.negf %234 : vector<2x32xf32>
    %236 = math.exp %235 : vector<2x32xf32>
    %cst_31 = arith.constant 1.000000e+00 : f32
    %237 = vector.broadcast %cst_31 : f32 to vector<2x32xf32>
    %238 = arith.addf %237, %236 : vector<2x32xf32>
    %239 = arith.divf %237, %238 : vector<2x32xf32>
    %240 = vector.extract_strided_slice %29 {offsets = [14, 0], sizes = [2, 32], strides = [1, 1]} : vector<16x32xf32> to vector<2x32xf32>
    %241 = vector.extract_strided_slice %231 {offsets = [0, 32], sizes = [2, 32], strides = [1, 1]} : vector<2x96xf32> to vector<2x32xf32>
    %242 = arith.addf %240, %241 : vector<2x32xf32>
    %243 = arith.negf %242 : vector<2x32xf32>
    %244 = math.exp %243 : vector<2x32xf32>
    %cst_32 = arith.constant 1.000000e+00 : f32
    %245 = vector.broadcast %cst_32 : f32 to vector<2x32xf32>
    %246 = arith.addf %245, %244 : vector<2x32xf32>
    %247 = arith.divf %245, %246 : vector<2x32xf32>
    %248 = vector.extract_strided_slice %30 {offsets = [14, 0], sizes = [2, 32], strides = [1, 1]} : vector<16x32xf32> to vector<2x32xf32>
    %249 = vector.extract_strided_slice %231 {offsets = [0, 64], sizes = [2, 32], strides = [1, 1]} : vector<2x96xf32> to vector<2x32xf32>
    %250 = vector.broadcast %32 : vector<1x32xf32> to vector<2x32xf32>
    %251 = arith.addf %249, %250 : vector<2x32xf32>
    %252 = arith.mulf %239, %251 : vector<2x32xf32>
    %253 = arith.addf %248, %252 : vector<2x32xf32>
    %254 = math.tanh %253 : vector<2x32xf32>
    %255 = arith.subf %229, %254 : vector<2x32xf32>
    %256 = arith.mulf %247, %255 : vector<2x32xf32>
    %257 = arith.addf %254, %256 : vector<2x32xf32>
    %258 = tpu.concatenate %61, %89, %117, %145, %173, %201, %229, %257 in 0 : vector<2x32xf32>, vector<2x32xf32>, vector<2x32xf32>, vector<2x32xf32>, vector<2x32xf32>, vector<2x32xf32>, vector<2x32xf32>, vector<2x32xf32> -> vector<16x32xf32>
    %c0_33 = arith.constant 0 : index
    %c0_34 = arith.constant 0 : index
    %259 = vector.load %arg6[%c0_33, %c0_34] : memref<32x4xf32, #tpu.memory_space<vmem>>, vector<32x4xf32>
    %cst_35 = arith.constant dense<0.000000e+00> : vector<16x4xf32>
    %260 = tpu.matmul %258, %259, %cst_35 {dimension_numbers = #tpu.dot_dimension_numbers<[1], [0], [0], [1], [0, 0, 1, 1], [], []>} : vector<16x32xf32>, vector<32x4xf32>, vector<16x4xf32> -> vector<16x4xf32>
    %c0_36 = arith.constant 0 : index
    %c0_37 = arith.constant 0 : index
    %261 = vector.load %arg1[%c0_36, %c0_37] : memref<16x4xf32, #tpu.memory_space<vmem>>, vector<16x4xf32>
    %c0_38 = arith.constant 0 : index
    %c0_39 = arith.constant 0 : index
    %262 = vector.load %arg7[%c0_38, %c0_39] : memref<4x4xf32, #tpu.memory_space<vmem>>, vector<4x4xf32>
    %263 = vector.extract_strided_slice %261 {offsets = [0, 0], sizes = [16, 1], strides = [1, 1]} : vector<16x4xf32> to vector<16x1xf32>
    %264 = vector.extract_strided_slice %262 {offsets = [0, 0], sizes = [1, 4], strides = [1, 1]} : vector<4x4xf32> to vector<1x4xf32>
    %265 = vector.broadcast %263 : vector<16x1xf32> to vector<16x4xf32>
    %266 = vector.broadcast %264 : vector<1x4xf32> to vector<16x4xf32>
    %267 = arith.mulf %265, %266 : vector<16x4xf32>
    %268 = vector.extract_strided_slice %261 {offsets = [0, 1], sizes = [16, 1], strides = [1, 1]} : vector<16x4xf32> to vector<16x1xf32>
    %269 = vector.extract_strided_slice %262 {offsets = [1, 0], sizes = [1, 4], strides = [1, 1]} : vector<4x4xf32> to vector<1x4xf32>
    %270 = vector.broadcast %268 : vector<16x1xf32> to vector<16x4xf32>
    %271 = vector.broadcast %269 : vector<1x4xf32> to vector<16x4xf32>
    %272 = arith.mulf %270, %271 : vector<16x4xf32>
    %273 = arith.addf %267, %272 : vector<16x4xf32>
    %274 = vector.extract_strided_slice %261 {offsets = [0, 2], sizes = [16, 1], strides = [1, 1]} : vector<16x4xf32> to vector<16x1xf32>
    %275 = vector.extract_strided_slice %262 {offsets = [2, 0], sizes = [1, 4], strides = [1, 1]} : vector<4x4xf32> to vector<1x4xf32>
    %276 = vector.broadcast %274 : vector<16x1xf32> to vector<16x4xf32>
    %277 = vector.broadcast %275 : vector<1x4xf32> to vector<16x4xf32>
    %278 = arith.mulf %276, %277 : vector<16x4xf32>
    %279 = arith.addf %273, %278 : vector<16x4xf32>
    %280 = vector.extract_strided_slice %261 {offsets = [0, 3], sizes = [16, 1], strides = [1, 1]} : vector<16x4xf32> to vector<16x1xf32>
    %281 = vector.extract_strided_slice %262 {offsets = [3, 0], sizes = [1, 4], strides = [1, 1]} : vector<4x4xf32> to vector<1x4xf32>
    %282 = vector.broadcast %280 : vector<16x1xf32> to vector<16x4xf32>
    %283 = vector.broadcast %281 : vector<1x4xf32> to vector<16x4xf32>
    %284 = arith.mulf %282, %283 : vector<16x4xf32>
    %285 = arith.addf %279, %284 : vector<16x4xf32>
    %c0_40 = arith.constant 0 : index
    %c0_41 = arith.constant 0 : index
    %286 = vector.load %arg8[%c0_40, %c0_41] : memref<64x16xf32, #tpu.memory_space<vmem>>, vector<64x16xf32>
    %cst_42 = arith.constant dense<0.000000e+00> : vector<64x4xf32>
    %287 = tpu.matmul %286, %285, %cst_42 {dimension_numbers = #tpu.dot_dimension_numbers<[1], [0], [0], [1], [0, 0, 1, 1], [], []>} : vector<64x16xf32>, vector<16x4xf32>, vector<64x4xf32> -> vector<64x4xf32>
    %c0_43 = arith.constant 0 : index
    %c0_44 = arith.constant 0 : index
    %288 = vector.load %arg9[%c0_43, %c0_44] : memref<64x1xf32, #tpu.memory_space<vmem>>, vector<64x1xf32>
    %289 = vector.broadcast %288 : vector<64x1xf32> to vector<64x4xf32>
    %290 = arith.addf %287, %289 : vector<64x4xf32>
    %cst_45 = arith.constant 0.000000e+00 : f32
    %291 = vector.broadcast %cst_45 : f32 to vector<64x4xf32>
    %292 = arith.maximumf %290, %291 : vector<64x4xf32>
    %c0_46 = arith.constant 0 : index
    %c0_47 = arith.constant 0 : index
    %293 = vector.load %arg10[%c0_46, %c0_47] : memref<16x64xf32, #tpu.memory_space<vmem>>, vector<16x64xf32>
    %cst_48 = arith.constant dense<0.000000e+00> : vector<16x4xf32>
    %294 = tpu.matmul %293, %292, %cst_48 {dimension_numbers = #tpu.dot_dimension_numbers<[1], [0], [0], [1], [0, 0, 1, 1], [], []>} : vector<16x64xf32>, vector<64x4xf32>, vector<16x4xf32> -> vector<16x4xf32>
    %c0_49 = arith.constant 0 : index
    %c0_50 = arith.constant 0 : index
    %295 = vector.load %arg11[%c0_49, %c0_50] : memref<1x4xf32, #tpu.memory_space<vmem>>, vector<1x4xf32>
    %296 = vector.broadcast %295 : vector<1x4xf32> to vector<16x4xf32>
    %297 = arith.mulf %294, %296 : vector<16x4xf32>
    %298 = arith.addf %260, %297 : vector<16x4xf32>
    %c0_51 = arith.constant 0 : index
    %c0_52 = arith.constant 0 : index
    %299 = vector.load %arg12[%c0_51, %c0_52] : memref<16x4xf32, #tpu.memory_space<vmem>>, vector<16x4xf32>
    %300 = arith.addf %298, %299 : vector<16x4xf32>
    %c0_53 = arith.constant 0 : index
    %c0_54 = arith.constant 0 : index
    %301 = vector.load %arg13[%c0_53, %c0_54] : memref<16x4xf32, #tpu.memory_space<vmem>>, vector<16x4xf32>
    tpu.vector_store %arg13[%c0_53, %c0_54], %300 {strides = array<i32>} : memref<16x4xf32, #tpu.memory_space<vmem>>, vector<16x4xf32>,
    return
  }
}

</mosaic_0001>

<llo_original>
// kernel: tpu_custom_call.1
$region0: #{tpu_custom_call.1}
  #allocation0 [shape = 'u32[]', space=smem, size = 0x4, offset = 0x4, fixed_abs, tag = 'smem constant byte address 0x4 - core index']
  #allocation1 [shape = 'u32[144,128]{1,0:T(1,128)}', space=vmem, size = 0x12000, scoped, tag = 'internal scratch']
  %s0 = inlined_call_operand.vmem [shape: f32[16,4], index: 0, kind: input, shape index: {}]
  %s1 = inlined_call_operand.vmem [shape: f32[16,4], index: 1, kind: input, shape index: {}]
  %s2 = inlined_call_operand.vmem [shape: f32[4,96], index: 2, kind: input, shape index: {}]
  %s3 = inlined_call_operand.vmem [shape: f32[1,96], index: 3, kind: input, shape index: {}]
  %s4 = inlined_call_operand.vmem [shape: bf16[32,96], index: 4, kind: input, shape index: {}]
  %s5 = inlined_call_operand.vmem [shape: f32[1,32], index: 5, kind: input, shape index: {}]
  %s6 = inlined_call_operand.vmem [shape: f32[32,4], index: 6, kind: input, shape index: {}]
  %s7 = inlined_call_operand.vmem [shape: f32[4,4], index: 7, kind: input, shape index: {}]
  %s8 = inlined_call_operand.vmem [shape: f32[64,16], index: 8, kind: input, shape index: {}]
  %s9 = inlined_call_operand.vmem [shape: f32[64,1], index: 9, kind: input, shape index: {}]
  %s10 = inlined_call_operand.vmem [shape: f32[16,64], index: 10, kind: input, shape index: {}]
  %s11 = inlined_call_operand.vmem [shape: f32[1,4], index: 11, kind: input, shape index: {}]
  %s12 = inlined_call_operand.vmem [shape: f32[16,4], index: 12, kind: input, shape index: {}]
  %s13 = inlined_call_operand.vmem [shape: f32[16,4], index: 13, kind: output, shape index: {}]
  %s14 = sld [smem:[#allocation0]]
  $region62: #{tpu_custom_call.1} parent=0
    _
  %s16 = ssub.s32 1, %s14
  %s17 = scalar_select 0, %s16, %s14
  // Predicated region
  $region2: #{tpu_custom_call.1} parent=0 // pred_check
    _
  $region3: #{tpu_custom_call.1} parent=0 // pred_check_branch
    %19 = sbr.rel (0) target = $region5
  $region4: #{tpu_custom_call.1} parent=0 // pred_region
    _
  $region5: #{tpu_custom_call.1} parent=0 // pred_fallthru
    _
  // Predicated region
  $region6: #{tpu_custom_call.1} parent=0 // pred_check
    _
  $region7: #{tpu_custom_call.1} parent=0 // pred_check_branch
    %21 = sbr.rel (0) target = $region9
  $region8: #{tpu_custom_call.1} parent=0 // pred_region
    _
  $region9: #{tpu_custom_call.1} parent=0 // pred_fallthru
    _
  // Predicated region
  $region10: #{tpu_custom_call.1} parent=0 // pred_check
    _
  $region11: #{tpu_custom_call.1} parent=0 // pred_check_branch
    %23 = sbr.rel (0) target = $region13
  $region12: #{tpu_custom_call.1} parent=0 // pred_region
    _
  $region13: #{tpu_custom_call.1} parent=0 // pred_fallthru
    _
  // Predicated region
  $region14: #{tpu_custom_call.1} parent=0 // pred_check
    _
  $region15: #{tpu_custom_call.1} parent=0 // pred_check_branch
    %25 = sbr.rel (0) target = $region17
  $region16: #{tpu_custom_call.1} parent=0 // pred_region
    _
  $region17: #{tpu_custom_call.1} parent=0 // pred_fallthru
    _
  // Predicated region
  $region18: #{tpu_custom_call.1} parent=0 // pred_check
    _
  $region19: #{tpu_custom_call.1} parent=0 // pred_check_branch
    %27 = sbr.rel (0) target = $region21
  $region20: #{tpu_custom_call.1} parent=0 // pred_region
    _
  $region21: #{tpu_custom_call.1} parent=0 // pred_fallthru
    _
  // Predicated region
  $region22: #{tpu_custom_call.1} parent=0 // pred_check
    _
  $region23: #{tpu_custom_call.1} parent=0 // pred_check_branch
    %29 = sbr.rel (0) target = $region25
  $region24: #{tpu_custom_call.1} parent=0 // pred_region
    _
  $region25: #{tpu_custom_call.1} parent=0 // pred_fallthru
    _
  // Predicated region
  $region26: #{tpu_custom_call.1} parent=0 // pred_check
    _
  $region27: #{tpu_custom_call.1} parent=0 // pred_check_branch
    %31 = sbr.rel (0) target = $region29
  $region28: #{tpu_custom_call.1} parent=0 // pred_region
    _
  $region29: #{tpu_custom_call.1} parent=0 // pred_fallthru
    _
  // Predicated region
  $region30: #{tpu_custom_call.1} parent=0 // pred_check
    _
  $region31: #{tpu_custom_call.1} parent=0 // pred_check_branch
    %33 = sbr.rel (0) target = $region33
  $region32: #{tpu_custom_call.1} parent=0 // pred_region
    _
  $region33: #{tpu_custom_call.1} parent=0 // pred_fallthru
    _
  // Predicated region
  $region34: #{tpu_custom_call.1} parent=0 // pred_check
    _
  $region35: #{tpu_custom_call.1} parent=0 // pred_check_branch
    %35 = sbr.rel (0) target = $region37
  $region36: #{tpu_custom_call.1} parent=0 // pred_region
    _
  $region37: #{tpu_custom_call.1} parent=0 // pred_fallthru
    _
  // Predicated region
  $region38: #{tpu_custom_call.1} parent=0 // pred_check
    _
  $region39: #{tpu_custom_call.1} parent=0 // pred_check_branch
    %37 = sbr.rel (0) target = $region41
  $region40: #{tpu_custom_call.1} parent=0 // pred_region
    _
  $region41: #{tpu_custom_call.1} parent=0 // pred_fallthru
    _
  // Predicated region
  $region42: #{tpu_custom_call.1} parent=0 // pred_check
    _
  $region43: #{tpu_custom_call.1} parent=0 // pred_check_branch
    %39 = sbr.rel (0) target = $region45
  $region44: #{tpu_custom_call.1} parent=0 // pred_region
    _
  $region45: #{tpu_custom_call.1} parent=0 // pred_fallthru
    _
  // Predicated region
  $region46: #{tpu_custom_call.1} parent=0 // pred_check
    _
  $region47: #{tpu_custom_call.1} parent=0 // pred_check_branch
    %41 = sbr.rel (0) target = $region49
  $region48: #{tpu_custom_call.1} parent=0 // pred_region
    _
  $region49: #{tpu_custom_call.1} parent=0 // pred_fallthru
    _
  // Predicated region
  $region50: #{tpu_custom_call.1} parent=0 // pred_check
    _
  $region51: #{tpu_custom_call.1} parent=0 // pred_check_branch
    %43 = sbr.rel (0) target = $region53
  $region52: #{tpu_custom_call.1} parent=0 // pred_region
    _
  $region53: #{tpu_custom_call.1} parent=0 // pred_fallthru
    _
  %v45 = vld [vmem:[%s0] sm:$0xff]
  %v46 = vld [vmem:[%s0 + $0x8] sm:$0xff]
  %v47 = vld [vmem:[%s2] sm:$0xf]
  %v48 = vld [vmem:[%s3] sm:$0x1]
  %50 = vset.pattern.permute.xlu0 0
  %51 = vperm.xlu0 %50, %v45
  %v52 = vpop.permute.xlu0 %51
  %55 = vset.pattern.permute.xlu0 0
  %56 = vperm.xlu0 %55, %v46
  %v57 = vpop.permute.xlu0 %56
  %v59 = vlaneseq
  %v60 = vshrl.u32 %v59, 7
  %v61 = vsub.s32 0, %v60
  %v62 = vrot.slane %v47, %v61
  %v63 = vmul.f32 %v52, %v62
  %v64 = vmul.f32 %v57, %v62
  %v66 = vlaneseq
  %v67 = vshrl.u32 %v66, 7
  %v68 = vsub.s32 0, %v67
  %v69 = vrot.slane %v48, %v68
  %v71 = vadd.f32 %v69, %v63
  %v72 = vadd.f32 %v69, %v64
  %73 = vset.pattern.permute.xlu0 1
  %74 = vperm.xlu0 %73, %v45
  %v75 = vpop.permute.xlu0 %74
  %77 = vset.pattern.permute.xlu0 1
  %78 = vperm.xlu0 %77, %v46
  %v79 = vpop.permute.xlu0 %78
  %v81 = vlaneseq
  %v82 = vshrl.u32 %v81, 7
  %v83 = vsub.s32 1, %v82
  %v84 = vrot.slane %v47, %v83
  %v85 = vmul.f32 %v75, %v84
  %v86 = vmul.f32 %v79, %v84
  %v87 = vadd.f32 %v71, %v85
  %v88 = vadd.f32 %v72, %v86
  %89 = vset.pattern.permute.xlu0 2
  %90 = vperm.xlu0 %89, %v45
  %v91 = vpop.permute.xlu0 %90
  %93 = vset.pattern.permute.xlu0 2
  %94 = vperm.xlu0 %93, %v46
  %v95 = vpop.permute.xlu0 %94
  %v97 = vlaneseq
  %v98 = vshrl.u32 %v97, 7
  %v99 = vsub.s32 2, %v98
  %v100 = vrot.slane %v47, %v99
  %v101 = vmul.f32 %v91, %v100
  %v102 = vmul.f32 %v95, %v100
  %v103 = vadd.f32 %v87, %v101
  %v104 = vadd.f32 %v88, %v102
  %105 = vset.pattern.permute.xlu0 3
  %106 = vperm.xlu0 %105, %v45
  %v107 = vpop.permute.xlu0 %106
  %109 = vset.pattern.permute.xlu0 3
  %110 = vperm.xlu0 %109, %v46
  %v111 = vpop.permute.xlu0 %110
  %v113 = vlaneseq
  %v114 = vshrl.u32 %v113, 7
  %v115 = vsub.s32 3, %v114
  %v116 = vrot.slane %v47, %v115
  %v117 = vmul.f32 %v107, %v116
  %v118 = vmul.f32 %v111, %v116
  %v119 = vadd.f32 %v103, %v117
  %v120 = vadd.f32 %v104, %v118
  %v121 = vld [vmem:[%s4] sm:$0xf]
  %v122 = vld [vmem:[%s4 + $0x4] sm:$0xf]
  %v123 = vld [vmem:[%s4 + $0x8] sm:$0xf]
  %v124 = vld [vmem:[%s4 + $0xc] sm:$0xf]
  %v125 = vld [vmem:[%s5] sm:$0x1]
  %v130 = vunpack.c.l.b16 %v121
  %v131 = vunpack.c.l.b16 %v122
  %v132 = vunpack.c.l.b16 %v123
  %v133 = vunpack.c.l.b16 %v124
  %v134 = vpack.c.b16 %v131, %v130
  %v135 = vpack.c.b16 %v133, %v132
  %vm138 = vcmask 261120
  %v140 = vsel %vm138, 0, 0
  %142 = vmatprep.subr.bf16.mxu0 0
  %143 = vmatpush1.bf16.msra.mxu0 %v134
  %144 = vmatprep.subr.bf16.mxu0 0
  %145 = vmatpush1.bf16.msra.mxu0 %v135
  %146 = vmatprep.subr.bf16.mxu0 0
  %147 = vmatpush1.bf16.msra.mxu0 0
  %148 = vmatprep.subr.bf16.mxu0 0
  %149 = vmatpush1.bf16.msra.mxu0 0
  %150 = vmatprep.subr.bf16.mxu0 0
  %151 = vmatpush1.bf16.msra.mxu0 0
  %152 = vmatprep.subr.bf16.mxu0 0
  %153 = vmatpush1.bf16.msra.mxu0 0
  %154 = vmatprep.subr.bf16.mxu0 0
  %155 = vmatpush1.bf16.msra.mxu0 0
  %156 = vmatprep.subr.bf16.mxu0 0
  %157 = vmatpush1.bf16.msra.mxu0 0
  %158 = vmatprep.subr.bf16.mxu0 0
  %159 = vmatpush1.bf16.msra.mxu0 0
  %160 = vmatprep.subr.bf16.mxu0 0
  %161 = vmatpush1.bf16.msra.mxu0 0
  %162 = vmatprep.subr.bf16.mxu0 0
  %163 = vmatpush1.bf16.msra.mxu0 0
  %164 = vmatprep.subr.bf16.mxu0 0
  %165 = vmatpush1.bf16.msra.mxu0 0
  %166 = vmatprep.subr.bf16.mxu0 0
  %167 = vmatpush1.bf16.msra.mxu0 0
  %168 = vmatprep.subr.bf16.mxu0 0
  %169 = vmatpush1.bf16.msra.mxu0 0
  %170 = vmatprep.subr.bf16.mxu0 0
  %171 = vmatpush1.bf16.msra.mxu0 0
  %172 = vmatprep.subr.bf16.mxu0 0
  %173 = vmatpush1.bf16.msra.mxu0 0
  %174 = vmatprep.mubr.bf16.mxu0 0
  %175 = vmatmul.mubr.bf16.gmra.mrb[0].mxu0 %v140
  %v176 = vpop.f32.mrb[0].mxu0
  %v177 = vadd.f32 0.0, %v176
  %v178 = vpop.f32.mrb[0].mxu0
  %v179 = vpop.f32.mrb[0].mxu0
  %v180 = vpop.f32.mrb[0].mxu0
  %181 = vdwg.mxu0
  %v182 = vadd.f32 %v119, %v177
  %v183 = vxor.u32 %v182, 2147483648
  %v184 = vmul.f32 %v183, 1.442695
  %v185 = vpow.pop %v184
  %v186 = vadd.f32 %v185, 1.0
  %v187 = vrcp.pop %v186
  %v188 = vmul.f32 1.0, %v187
  %v190 = vlaneseq
  %v191 = vshrl.u32 %v190, 7
  %v192 = vsub.s32 0, %v191
  %v193 = vrot.slane %v125, %v192
  %194 = vrot.lane.b32.xlu0 %v193, 64
  %v195 = vpop.permute.xlu0 %194
  %v197 = vadd.f32 %v177, %v195
  %199 = vrot.lane.b32.xlu0 %v197, 64
  %v200 = vpop.permute.xlu0 %199
  %v202 = vmul.f32 %v188, %v200
  %204 = vrot.lane.b32.xlu0 %v202, 64
  %v205 = vpop.permute.xlu0 %204
  %v207 = vadd.f32 %v119, %v205
  %v208 = vtanh.pop %v207
  %v209 = vsub.f32 0.0, %v208
  %211 = vrot.lane.b32.xlu0 %v209, 96
  %v212 = vpop.permute.xlu0 %211
  %v214 = vmul.f32 %v188, %v212
  %216 = vrot.lane.b32.xlu0 %v214, 32
  %v217 = vpop.permute.xlu0 %216
  %v219 = vadd.f32 %v208, %v217
  %v220 = vpack.c.bf16 %v219, %v219
  %222 = vrot.lane.b32.xlu0 %v220, 64
  %v223 = vpop.permute.xlu0 %222
  %v225 = vsel %vm138, %v223, 0
  %227 = vmatprep.subr.bf16.mxu0 0
  %228 = vmatpush1.bf16.msra.mxu0 %v134
  %229 = vmatprep.subr.bf16.mxu0 0
  %230 = vmatpush1.bf16.msra.mxu0 %v135
  %231 = vmatprep.subr.bf16.mxu0 0
  %232 = vmatpush1.bf16.msra.mxu0 0
  %233 = vmatprep.subr.bf16.mxu0 0
  %234 = vmatpush1.bf16.msra.mxu0 0
  %235 = vmatprep.subr.bf16.mxu0 0
  %236 = vmatpush1.bf16.msra.mxu0 0
  %237 = vmatprep.subr.bf16.mxu0 0
  %238 = vmatpush1.bf16.msra.mxu0 0
  %239 = vmatprep.subr.bf16.mxu0 0
  %240 = vmatpush1.bf16.msra.mxu0 0
  %241 = vmatprep.subr.bf16.mxu0 0
  %242 = vmatpush1.bf16.msra.mxu0 0
  %243 = vmatprep.subr.bf16.mxu0 0
  %244 = vmatpush1.bf16.msra.mxu0 0
  %245 = vmatprep.subr.bf16.mxu0 0
  %246 = vmatpush1.bf16.msra.mxu0 0
  %247 = vmatprep.subr.bf16.mxu0 0
  %248 = vmatpush1.bf16.msra.mxu0 0
  %249 = vmatprep.subr.bf16.mxu0 0
  %250 = vmatpush1.bf16.msra.mxu0 0
  %251 = vmatprep.subr.bf16.mxu0 0
  %252 = vmatpush1.bf16.msra.mxu0 0
  %253 = vmatprep.subr.bf16.mxu0 0
  %254 = vmatpush1.bf16.msra.mxu0 0
  %255 = vmatprep.subr.bf16.mxu0 0
  %256 = vmatpush1.bf16.msra.mxu0 0
  %257 = vmatprep.subr.bf16.mxu0 0
  %258 = vmatpush1.bf16.msra.mxu0 0
  %259 = vmatprep.mubr.bf16.mxu0 0
  %260 = vmatmul.mubr.bf16.gmra.mrb[0].mxu0 %v225
  %v261 = vpop.f32.mrb[0].mxu0
  %v262 = vadd.f32 0.0, %v261
  %v263 = vpop.f32.mrb[0].mxu0
  %v264 = vpop.f32.mrb[0].mxu0
  %v265 = vpop.f32.mrb[0].mxu0
  %266 = vdwg.mxu0
  %v268 = vrot.slane %v262, 6
  %v270 = vadd.f32 %v119, %v268
  %v271 = vxor.u32 %v270, 2147483648
  %v272 = vmul.f32 %v271, 1.442695
  %v273 = vpow.pop %v272
  %v274 = vadd.f32 %v273, 1.0
  %v275 = vrcp.pop %v274
  %v276 = vmul.f32 1.0, %v275
  %v277 = vadd.f32 %v262, %v195
  %v279 = vrot.slane %v277, 6
  %280 = vrot.lane.b32.xlu0 %v279, 64
  %v281 = vpop.permute.xlu0 %280
  %v283 = vmul.f32 %v276, %v281
  %285 = vrot.lane.b32.xlu0 %v283, 64
  %v286 = vpop.permute.xlu0 %285
  %v288 = vadd.f32 %v119, %v286
  %v289 = vtanh.pop %v288
  %v291 = vrot.slane %v289, 2
  %v293 = vsub.f32 %v219, %v291
  %v295 = vrot.slane %v293, 6
  %296 = vrot.lane.b32.xlu0 %v295, 96
  %v297 = vpop.permute.xlu0 %296
  %v299 = vmul.f32 %v276, %v297
  %301 = vrot.lane.b32.xlu0 %v299, 32
  %v302 = vpop.permute.xlu0 %301
  %v304 = vadd.f32 %v289, %v302
  %v305 = vpack.c.bf16 %v304, %v304
  %v307 = vrot.slane %v305, 1
  %308 = vrot.lane.b32.xlu0 %v307, 64
  %v309 = vpop.permute.xlu0 %308
  %v311 = vsel %vm138, %v309, 0
  %313 = vmatprep.subr.bf16.mxu0 0
  %314 = vmatpush1.bf16.msra.mxu0 %v134
  %315 = vmatprep.subr.bf16.mxu0 0
  %316 = vmatpush1.bf16.msra.mxu0 %v135
  %317 = vmatprep.subr.bf16.mxu0 0
  %318 = vmatpush1.bf16.msra.mxu0 0
  %319 = vmatprep.subr.bf16.mxu0 0
  %320 = vmatpush1.bf16.msra.mxu0 0
  %321 = vmatprep.subr.bf16.mxu0 0
  %322 = vmatpush1.bf16.msra.mxu0 0
  %323 = vmatprep.subr.bf16.mxu0 0
  %324 = vmatpush1.bf16.msra.mxu0 0
  %325 = vmatprep.subr.bf16.mxu0 0
  %326 = vmatpush1.bf16.msra.mxu0 0
  %327 = vmatprep.subr.bf16.mxu0 0
  %328 = vmatpush1.bf16.msra.mxu0 0
  %329 = vmatprep.subr.bf16.mxu0 0
  %330 = vmatpush1.bf16.msra.mxu0 0
  %331 = vmatprep.subr.bf16.mxu0 0
  %332 = vmatpush1.bf16.msra.mxu0 0
  %333 = vmatprep.subr.bf16.mxu0 0
  %334 = vmatpush1.bf16.msra.mxu0 0
  %335 = vmatprep.subr.bf16.mxu0 0
  %336 = vmatpush1.bf16.msra.mxu0 0
  %337 = vmatprep.subr.bf16.mxu0 0
  %338 = vmatpush1.bf16.msra.mxu0 0
  %339 = vmatprep.subr.bf16.mxu0 0
  %340 = vmatpush1.bf16.msra.mxu0 0
  %341 = vmatprep.subr.bf16.mxu0 0
  %342 = vmatpush1.bf16.msra.mxu0 0
  %343 = vmatprep.subr.bf16.mxu0 0
  %344 = vmatpush1.bf16.msra.mxu0 0
  %345 = vmatprep.mubr.bf16.mxu0 0
  %346 = vmatmul.mubr.bf16.gmra.mrb[0].mxu0 %v311
  %v347 = vpop.f32.mrb[0].mxu0
  %v348 = vadd.f32 0.0, %v347
  %v349 = vpop.f32.mrb[0].mxu0
  %v350 = vpop.f32.mrb[0].mxu0
  %v351 = vpop.f32.mrb[0].mxu0
  %352 = vdwg.mxu0
  %v354 = vrot.slane %v348, 4
  %v356 = vadd.f32 %v119, %v354
  %v357 = vxor.u32 %v356, 2147483648
  %v358 = vmul.f32 %v357, 1.442695
  %v359 = vpow.pop %v358
  %v360 = vadd.f32 %v359, 1.0
  %v361 = vrcp.pop %v360
  %v362 = vmul.f32 1.0, %v361
  %v363 = vadd.f32 %v348, %v195
  %v365 = vrot.slane %v363, 4
  %366 = vrot.lane.b32.xlu0 %v365, 64
  %v367 = vpop.permute.xlu0 %366
  %v369 = vmul.f32 %v362, %v367
  %371 = vrot.lane.b32.xlu0 %v369, 64
  %v372 = vpop.permute.xlu0 %371
  %v374 = vadd.f32 %v119, %v372
  %v375 = vtanh.pop %v374
  %v377 = vrot.slane %v375, 2
  %v379 = vsub.f32 %v304, %v377
  %v381 = vrot.slane %v379, 6
  %382 = vrot.lane.b32.xlu0 %v381, 96
  %v383 = vpop.permute.xlu0 %382
  %v385 = vmul.f32 %v362, %v383
  %387 = vrot.lane.b32.xlu0 %v385, 32
  %v388 = vpop.permute.xlu0 %387
  %v390 = vadd.f32 %v375, %v388
  %v391 = vpack.c.bf16 %v390, %v390
  %v393 = vrot.slane %v391, 2
  %394 = vrot.lane.b32.xlu0 %v393, 64
  %v395 = vpop.permute.xlu0 %394
  %v397 = vsel %vm138, %v395, 0
  %399 = vmatprep.subr.bf16.mxu0 0
  %400 = vmatpush1.bf16.msra.mxu0 %v134
  %401 = vmatprep.subr.bf16.mxu0 0
  %402 = vmatpush1.bf16.msra.mxu0 %v135
  %403 = vmatprep.subr.bf16.mxu0 0
  %404 = vmatpush1.bf16.msra.mxu0 0
  %405 = vmatprep.subr.bf16.mxu0 0
  %406 = vmatpush1.bf16.msra.mxu0 0
  %407 = vmatprep.subr.bf16.mxu0 0
  %408 = vmatpush1.bf16.msra.mxu0 0
  %409 = vmatprep.subr.bf16.mxu0 0
  %410 = vmatpush1.bf16.msra.mxu0 0
  %411 = vmatprep.subr.bf16.mxu0 0
  %412 = vmatpush1.bf16.msra.mxu0 0
  %413 = vmatprep.subr.bf16.mxu0 0
  %414 = vmatpush1.bf16.msra.mxu0 0
  %415 = vmatprep.subr.bf16.mxu0 0
  %416 = vmatpush1.bf16.msra.mxu0 0
  %417 = vmatprep.subr.bf16.mxu0 0
  %418 = vmatpush1.bf16.msra.mxu0 0
  %419 = vmatprep.subr.bf16.mxu0 0
  %420 = vmatpush1.bf16.msra.mxu0 0
  %421 = vmatprep.subr.bf16.mxu0 0
  %422 = vmatpush1.bf16.msra.mxu0 0
  %423 = vmatprep.subr.bf16.mxu0 0
  %424 = vmatpush1.bf16.msra.mxu0 0
  %425 = vmatprep.subr.bf16.mxu0 0
  %426 = vmatpush1.bf16.msra.mxu0 0
  %427 = vmatprep.subr.bf16.mxu0 0
  %428 = vmatpush1.bf16.msra.mxu0 0
  %429 = vmatprep.subr.bf16.mxu0 0
  %430 = vmatpush1.bf16.msra.mxu0 0
  %431 = vmatprep.mubr.bf16.mxu0 0
  %432 = vmatmul.mubr.bf16.gmra.mrb[0].mxu0 %v397
  %v433 = vpop.f32.mrb[0].mxu0
  %v434 = vadd.f32 0.0, %v433
  %v435 = vpop.f32.mrb[0].mxu0
  %v436 = vpop.f32.mrb[0].mxu0
  %v437 = vpop.f32.mrb[0].mxu0
  %438 = vdwg.mxu0
  %v440 = vrot.slane %v434, 2
  %v442 = vadd.f32 %v119, %v440
  %v443 = vxor.u32 %v442, 2147483648
  %v444 = vmul.f32 %v443, 1.442695
  %v445 = vpow.pop %v444
  %v446 = vadd.f32 %v445, 1.0
  %v447 = vrcp.pop %v446
  %v448 = vmul.f32 1.0, %v447
  %v449 = vadd.f32 %v434, %v195
  %v451 = vrot.slane %v449, 2
  %452 = vrot.lane.b32.xlu0 %v451, 64
  %v453 = vpop.permute.xlu0 %452
  %v455 = vmul.f32 %v448, %v453
  %457 = vrot.lane.b32.xlu0 %v455, 64
  %v458 = vpop.permute.xlu0 %457
  %v460 = vadd.f32 %v119, %v458
  %v461 = vtanh.pop %v460
  %v463 = vrot.slane %v461, 2
  %v465 = vsub.f32 %v390, %v463
  %v467 = vrot.slane %v465, 6
  %468 = vrot.lane.b32.xlu0 %v467, 96
  %v469 = vpop.permute.xlu0 %468
  %v471 = vmul.f32 %v448, %v469
  %473 = vrot.lane.b32.xlu0 %v471, 32
  %v474 = vpop.permute.xlu0 %473
  %v476 = vadd.f32 %v461, %v474
  %v477 = vpack.c.bf16 %v476, %v476
  %v479 = vrot.slane %v477, 3
  %480 = vrot.lane.b32.xlu0 %v479, 64
  %v481 = vpop.permute.xlu0 %480
  %v483 = vsel %vm138, %v481, 0
  %485 = vmatprep.subr.bf16.mxu0 0
  %486 = vmatpush1.bf16.msra.mxu0 %v134
  %487 = vmatprep.subr.bf16.mxu0 0
  %488 = vmatpush1.bf16.msra.mxu0 %v135
  %489 = vmatprep.subr.bf16.mxu0 0
  %490 = vmatpush1.bf16.msra.mxu0 0
  %491 = vmatprep.subr.bf16.mxu0 0
  %492 = vmatpush1.bf16.msra.mxu0 0
  %493 = vmatprep.subr.bf16.mxu0 0
  %494 = vmatpush1.bf16.msra.mxu0 0
  %495 = vmatprep.subr.bf16.mxu0 0
  %496 = vmatpush1.bf16.msra.mxu0 0
  %497 = vmatprep.subr.bf16.mxu0 0
  %498 = vmatpush1.bf16.msra.mxu0 0
  %499 = vmatprep.subr.bf16.mxu0 0
  %500 = vmatpush1.bf16.msra.mxu0 0
  %501 = vmatprep.subr.bf16.mxu0 0
  %502 = vmatpush1.bf16.msra.mxu0 0
  %503 = vmatprep.subr.bf16.mxu0 0
  %504 = vmatpush1.bf16.msra.mxu0 0
  %505 = vmatprep.subr.bf16.mxu0 0
  %506 = vmatpush1.bf16.msra.mxu0 0
  %507 = vmatprep.subr.bf16.mxu0 0
  %508 = vmatpush1.bf16.msra.mxu0 0
  %509 = vmatprep.subr.bf16.mxu0 0
  %510 = vmatpush1.bf16.msra.mxu0 0
  %511 = vmatprep.subr.bf16.mxu0 0
  %512 = vmatpush1.bf16.msra.mxu0 0
  %513 = vmatprep.subr.bf16.mxu0 0
  %514 = vmatpush1.bf16.msra.mxu0 0
  %515 = vmatprep.subr.bf16.mxu0 0
  %516 = vmatpush1.bf16.msra.mxu0 0
  %517 = vmatprep.mubr.bf16.mxu0 0
  %518 = vmatmul.mubr.bf16.gmra.mrb[0].mxu0 %v483
  %v519 = vpop.f32.mrb[0].mxu0
  %v520 = vadd.f32 0.0, %v519
  %v521 = vpop.f32.mrb[0].mxu0
  %v522 = vpop.f32.mrb[0].mxu0
  %v523 = vpop.f32.mrb[0].mxu0
  %524 = vdwg.mxu0
  %v525 = vadd.f32 %v120, %v520
  %v526 = vxor.u32 %v525, 2147483648
  %v527 = vmul.f32 %v526, 1.442695
  %v528 = vpow.pop %v527
  %v529 = vadd.f32 %v528, 1.0
  %v530 = vrcp.pop %v529
  %v531 = vmul.f32 1.0, %v530
  %v532 = vadd.f32 %v520, %v195
  %534 = vrot.lane.b32.xlu0 %v532, 64
  %v535 = vpop.permute.xlu0 %534
  %v537 = vmul.f32 %v531, %v535
  %539 = vrot.lane.b32.xlu0 %v537, 64
  %v540 = vpop.permute.xlu0 %539
  %v542 = vadd.f32 %v120, %v540
  %v543 = vtanh.pop %v542
  %v545 = vrot.slane %v543, 2
  %v547 = vsub.f32 %v476, %v545
  %v549 = vrot.slane %v547, 6
  %550 = vrot.lane.b32.xlu0 %v549, 96
  %v551 = vpop.permute.xlu0 %550
  %v553 = vmul.f32 %v531, %v551
  %555 = vrot.lane.b32.xlu0 %v553, 32
  %v556 = vpop.permute.xlu0 %555
  %v558 = vadd.f32 %v543, %v556
  %v559 = vpack.c.bf16 %v558, %v558
  %561 = vrot.lane.b32.xlu0 %v559, 64
  %v562 = vpop.permute.xlu0 %561
  %v564 = vsel %vm138, %v562, 0
  %566 = vmatprep.subr.bf16.mxu0 0
  %567 = vmatpush1.bf16.msra.mxu0 %v134
  %568 = vmatprep.subr.bf16.mxu0 0
  %569 = vmatpush1.bf16.msra.mxu0 %v135
  %570 = vmatprep.subr.bf16.mxu0 0
  %571 = vmatpush1.bf16.msra.mxu0 0
  %572 = vmatprep.subr.bf16.mxu0 0
  %573 = vmatpush1.bf16.msra.mxu0 0
  %574 = vmatprep.subr.bf16.mxu0 0
  %575 = vmatpush1.bf16.msra.mxu0 0
  %576 = vmatprep.subr.bf16.mxu0 0
  %577 = vmatpush1.bf16.msra.mxu0 0
  %578 = vmatprep.subr.bf16.mxu0 0
  %579 = vmatpush1.bf16.msra.mxu0 0
  %580 = vmatprep.subr.bf16.mxu0 0
  %581 = vmatpush1.bf16.msra.mxu0 0
  %582 = vmatprep.subr.bf16.mxu0 0
  %583 = vmatpush1.bf16.msra.mxu0 0
  %584 = vmatprep.subr.bf16.mxu0 0
  %585 = vmatpush1.bf16.msra.mxu0 0
  %586 = vmatprep.subr.bf16.mxu0 0
  %587 = vmatpush1.bf16.msra.mxu0 0
  %588 = vmatprep.subr.bf16.mxu0 0
  %589 = vmatpush1.bf16.msra.mxu0 0
  %590 = vmatprep.subr.bf16.mxu0 0
  %591 = vmatpush1.bf16.msra.mxu0 0
  %592 = vmatprep.subr.bf16.mxu0 0
  %593 = vmatpush1.bf16.msra.mxu0 0
  %594 = vmatprep.subr.bf16.mxu0 0
  %595 = vmatpush1.bf16.msra.mxu0 0
  %596 = vmatprep.subr.bf16.mxu0 0
  %597 = vmatpush1.bf16.msra.mxu0 0
  %598 = vmatprep.mubr.bf16.mxu0 0
  %599 = vmatmul.mubr.bf16.gmra.mrb[0].mxu0 %v564
  %v600 = vpop.f32.mrb[0].mxu0
  %v601 = vadd.f32 0.0, %v600
  %v602 = vpop.f32.mrb[0].mxu0
  %v603 = vpop.f32.mrb[0].mxu0
  %v604 = vpop.f32.mrb[0].mxu0
  %605 = vdwg.mxu0
  %v607 = vrot.slane %v601, 6
  %v609 = vadd.f32 %v120, %v607
  %v610 = vxor.u32 %v609, 2147483648
  %v611 = vmul.f32 %v610, 1.442695
  %v612 = vpow.pop %v611
  %v613 = vadd.f32 %v612, 1.0
  %v614 = vrcp.pop %v613
  %v615 = vmul.f32 1.0, %v614
  %v616 = vadd.f32 %v601, %v195
  %v618 = vrot.slane %v616, 6
  %619 = vrot.lane.b32.xlu0 %v618, 64
  %v620 = vpop.permute.xlu0 %619
  %v622 = vmul.f32 %v615, %v620
  %624 = vrot.lane.b32.xlu0 %v622, 64
  %v625 = vpop.permute.xlu0 %624
  %v627 = vadd.f32 %v120, %v625
  %v628 = vtanh.pop %v627
  %v630 = vrot.slane %v628, 2
  %v632 = vsub.f32 %v558, %v630
  %v634 = vrot.slane %v632, 6
  %635 = vrot.lane.b32.xlu0 %v634, 96
  %v636 = vpop.permute.xlu0 %635
  %v638 = vmul.f32 %v615, %v636
  %640 = vrot.lane.b32.xlu0 %v638, 32
  %v641 = vpop.permute.xlu0 %640
  %v643 = vadd.f32 %v628, %v641
  %v644 = vpack.c.bf16 %v643, %v643
  %v646 = vrot.slane %v644, 1
  %647 = vrot.lane.b32.xlu0 %v646, 64
  %v648 = vpop.permute.xlu0 %647
  %v650 = vsel %vm138, %v648, 0
  %652 = vmatprep.subr.bf16.mxu0 0
  %653 = vmatpush1.bf16.msra.mxu0 %v134
  %654 = vmatprep.subr.bf16.mxu0 0
  %655 = vmatpush1.bf16.msra.mxu0 %v135
  %656 = vmatprep.subr.bf16.mxu0 0
  %657 = vmatpush1.bf16.msra.mxu0 0
  %658 = vmatprep.subr.bf16.mxu0 0
  %659 = vmatpush1.bf16.msra.mxu0 0
  %660 = vmatprep.subr.bf16.mxu0 0
  %661 = vmatpush1.bf16.msra.mxu0 0
  %662 = vmatprep.subr.bf16.mxu0 0
  %663 = vmatpush1.bf16.msra.mxu0 0
  %664 = vmatprep.subr.bf16.mxu0 0
  %665 = vmatpush1.bf16.msra.mxu0 0
  %666 = vmatprep.subr.bf16.mxu0 0
  %667 = vmatpush1.bf16.msra.mxu0 0
  %668 = vmatprep.subr.bf16.mxu0 0
  %669 = vmatpush1.bf16.msra.mxu0 0
  %670 = vmatprep.subr.bf16.mxu0 0
  %671 = vmatpush1.bf16.msra.mxu0 0
  %672 = vmatprep.subr.bf16.mxu0 0
  %673 = vmatpush1.bf16.msra.mxu0 0
  %674 = vmatprep.subr.bf16.mxu0 0
  %675 = vmatpush1.bf16.msra.mxu0 0
  %676 = vmatprep.subr.bf16.mxu0 0
  %677 = vmatpush1.bf16.msra.mxu0 0
  %678 = vmatprep.subr.bf16.mxu0 0
  %679 = vmatpush1.bf16.msra.mxu0 0
  %680 = vmatprep.subr.bf16.mxu0 0
  %681 = vmatpush1.bf16.msra.mxu0 0
  %682 = vmatprep.subr.bf16.mxu0 0
  %683 = vmatpush1.bf16.msra.mxu0 0
  %684 = vmatprep.mubr.bf16.mxu0 0
  %685 = vmatmul.mubr.bf16.gmra.mrb[0].mxu0 %v650
  %v686 = vpop.f32.mrb[0].mxu0
  %v687 = vadd.f32 0.0, %v686
  %v688 = vpop.f32.mrb[0].mxu0
  %v689 = vpop.f32.mrb[0].mxu0
  %v690 = vpop.f32.mrb[0].mxu0
  %691 = vdwg.mxu0
  %v693 = vrot.slane %v687, 4
  %v695 = vadd.f32 %v120, %v693
  %v696 = vxor.u32 %v695, 2147483648
  %v697 = vmul.f32 %v696, 1.442695
  %v698 = vpow.pop %v697
  %v699 = vadd.f32 %v698, 1.0
  %v700 = vrcp.pop %v699
  %v701 = vmul.f32 1.0, %v700
  %v702 = vadd.f32 %v687, %v195
  %v704 = vrot.slane %v702, 4
  %705 = vrot.lane.b32.xlu0 %v704, 64
  %v706 = vpop.permute.xlu0 %705
  %v708 = vmul.f32 %v701, %v706
  %710 = vrot.lane.b32.xlu0 %v708, 64
  %v711 = vpop.permute.xlu0 %710
  %v713 = vadd.f32 %v120, %v711
  %v714 = vtanh.pop %v713
  %v716 = vrot.slane %v714, 2
  %v718 = vsub.f32 %v643, %v716
  %v720 = vrot.slane %v718, 6
  %721 = vrot.lane.b32.xlu0 %v720, 96
  %v722 = vpop.permute.xlu0 %721
  %v724 = vmul.f32 %v701, %v722
  %726 = vrot.lane.b32.xlu0 %v724, 32
  %v727 = vpop.permute.xlu0 %726
  %v729 = vadd.f32 %v714, %v727
  %v730 = vpack.c.bf16 %v729, %v729
  %v732 = vrot.slane %v730, 2
  %733 = vrot.lane.b32.xlu0 %v732, 64
  %v734 = vpop.permute.xlu0 %733
  %v736 = vsel %vm138, %v734, 0
  %738 = vmatprep.subr.bf16.mxu0 0
  %739 = vmatpush1.bf16.msra.mxu0 %v134
  %740 = vmatprep.subr.bf16.mxu0 0
  %741 = vmatpush1.bf16.msra.mxu0 %v135
  %742 = vmatprep.subr.bf16.mxu0 0
  %743 = vmatpush1.bf16.msra.mxu0 0
  %744 = vmatprep.subr.bf16.mxu0 0
  %745 = vmatpush1.bf16.msra.mxu0 0
  %746 = vmatprep.subr.bf16.mxu0 0
  %747 = vmatpush1.bf16.msra.mxu0 0
  %748 = vmatprep.subr.bf16.mxu0 0
  %749 = vmatpush1.bf16.msra.mxu0 0
  %750 = vmatprep.subr.bf16.mxu0 0
  %751 = vmatpush1.bf16.msra.mxu0 0
  %752 = vmatprep.subr.bf16.mxu0 0
  %753 = vmatpush1.bf16.msra.mxu0 0
  %754 = vmatprep.subr.bf16.mxu0 0
  %755 = vmatpush1.bf16.msra.mxu0 0
  %756 = vmatprep.subr.bf16.mxu0 0
  %757 = vmatpush1.bf16.msra.mxu0 0
  %758 = vmatprep.subr.bf16.mxu0 0
  %759 = vmatpush1.bf16.msra.mxu0 0
  %760 = vmatprep.subr.bf16.mxu0 0
  %761 = vmatpush1.bf16.msra.mxu0 0
  %762 = vmatprep.subr.bf16.mxu0 0
  %763 = vmatpush1.bf16.msra.mxu0 0
  %764 = vmatprep.subr.bf16.mxu0 0
  %765 = vmatpush1.bf16.msra.mxu0 0
  %766 = vmatprep.subr.bf16.mxu0 0
  %767 = vmatpush1.bf16.msra.mxu0 0
  %768 = vmatprep.subr.bf16.mxu0 0
  %769 = vmatpush1.bf16.msra.mxu0 0
  %770 = vmatprep.mubr.bf16.mxu0 0
  %771 = vmatmul.mubr.bf16.gmra.mrb[0].mxu0 %v736
  %v772 = vpop.f32.mrb[0].mxu0
  %v773 = vadd.f32 0.0, %v772
  %v774 = vpop.f32.mrb[0].mxu0
  %v775 = vpop.f32.mrb[0].mxu0
  %v776 = vpop.f32.mrb[0].mxu0
  %777 = vdwg.mxu0
  %v779 = vrot.slane %v773, 2
  %v781 = vadd.f32 %v120, %v779
  %v782 = vxor.u32 %v781, 2147483648
  %v783 = vmul.f32 %v782, 1.442695
  %v784 = vpow.pop %v783
  %v785 = vadd.f32 %v784, 1.0
  %v786 = vrcp.pop %v785
  %v787 = vmul.f32 1.0, %v786
  %v788 = vadd.f32 %v773, %v195
  %v790 = vrot.slane %v788, 2
  %791 = vrot.lane.b32.xlu0 %v790, 64
  %v792 = vpop.permute.xlu0 %791
  %v794 = vmul.f32 %v787, %v792
  %796 = vrot.lane.b32.xlu0 %v794, 64
  %v797 = vpop.permute.xlu0 %796
  %v799 = vadd.f32 %v120, %v797
  %v800 = vtanh.pop %v799
  %v802 = vrot.slane %v800, 2
  %v804 = vsub.f32 %v729, %v802
  %v806 = vrot.slane %v804, 6
  %807 = vrot.lane.b32.xlu0 %v806, 96
  %v808 = vpop.permute.xlu0 %807
  %v810 = vmul.f32 %v787, %v808
  %812 = vrot.lane.b32.xlu0 %v810, 32
  %v813 = vpop.permute.xlu0 %812
  %v815 = vadd.f32 %v800, %v813
  %vm816 = vcmask 1041408
  %v817 = vsel %vm816, %v219, %v304
  %vm818 = vcmask 1043456
  %v819 = vsel %vm818, %v817, %v390
  %vm820 = vcmask 1045504
  %v821 = vsel %vm820, %v819, %v476
  %v822 = vsel %vm816, %v558, %v643
  %v823 = vsel %vm818, %v822, %v729
  %v824 = vsel %vm820, %v823, %v815
  %v825 = vld [vmem:[%s6] sm:$0xff]
  %v826 = vld [vmem:[%s6 + $0x8] sm:$0xff]
  %v827 = vld [vmem:[%s6 + $0x10] sm:$0xff]
  %v828 = vld [vmem:[%s6 + $0x18] sm:$0xff]
  %v829 = vld [vmem:[%s1] sm:$0xff]
  %v830 = vld [vmem:[%s1 + $0x8] sm:$0xff]
  %v831 = vld [vmem:[%s7] sm:$0xf]
  %833 = vset.pattern.permute.xlu0 0
  %834 = vperm.xlu0 %833, %v829
  %v835 = vpop.permute.xlu0 %834
  %838 = vset.pattern.permute.xlu0 0
  %839 = vperm.xlu0 %838, %v830
  %v840 = vpop.permute.xlu0 %839
  %v842 = vlaneseq
  %v843 = vshrl.u32 %v842, 7
  %v844 = vsub.s32 0, %v843
  %v845 = vrot.slane %v831, %v844
  %v846 = vmul.f32 %v835, %v845
  %v847 = vmul.f32 %v840, %v845
  %848 = vset.pattern.permute.xlu0 1
  %849 = vperm.xlu0 %848, %v829
  %v850 = vpop.permute.xlu0 %849
  %852 = vset.pattern.permute.xlu0 1
  %853 = vperm.xlu0 %852, %v830
  %v854 = vpop.permute.xlu0 %853
  %v856 = vlaneseq
  %v857 = vshrl.u32 %v856, 7
  %v858 = vsub.s32 1, %v857
  %v859 = vrot.slane %v831, %v858
  %v860 = vmul.f32 %v850, %v859
  %v861 = vmul.f32 %v854, %v859
  %v862 = vadd.f32 %v846, %v860
  %v863 = vadd.f32 %v847, %v861
  %864 = vset.pattern.permute.xlu0 2
  %865 = vperm.xlu0 %864, %v829
  %v866 = vpop.permute.xlu0 %865
  %868 = vset.pattern.permute.xlu0 2
  %869 = vperm.xlu0 %868, %v830
  %v870 = vpop.permute.xlu0 %869
  %v872 = vlaneseq
  %v873 = vshrl.u32 %v872, 7
  %v874 = vsub.s32 2, %v873
  %v875 = vrot.slane %v831, %v874
  %v876 = vmul.f32 %v866, %v875
  %v877 = vmul.f32 %v870, %v875
  %v878 = vadd.f32 %v862, %v876
  %v879 = vadd.f32 %v863, %v877
  %880 = vset.pattern.permute.xlu0 3
  %881 = vperm.xlu0 %880, %v829
  %v882 = vpop.permute.xlu0 %881
  %884 = vset.pattern.permute.xlu0 3
  %885 = vperm.xlu0 %884, %v830
  %v886 = vpop.permute.xlu0 %885
  %v888 = vlaneseq
  %v889 = vshrl.u32 %v888, 7
  %v890 = vsub.s32 3, %v889
  %v891 = vrot.slane %v831, %v890
  %v892 = vmul.f32 %v882, %v891
  %v893 = vmul.f32 %v886, %v891
  %v894 = vadd.f32 %v878, %v892
  %v895 = vadd.f32 %v879, %v893
  %v896 = vld [vmem:[%s8] sm:$0xff]
  %v897 = vld [vmem:[%s8 + $0x8] sm:$0xff]
  %v898 = vld [vmem:[%s8 + $0x10] sm:$0xff]
  %v899 = vld [vmem:[%s8 + $0x18] sm:$0xff]
  %v900 = vld [vmem:[%s8 + $0x20] sm:$0xff]
  %v901 = vld [vmem:[%s8 + $0x28] sm:$0xff]
  %v902 = vld [vmem:[%s8 + $0x30] sm:$0xff]
  %v903 = vld [vmem:[%s8 + $0x38] sm:$0xff]
  %v904 = vld [vmem:[%s9] sm:$0xff]
  %v905 = vld [vmem:[%s9 + $0x8] sm:$0xff]
  %v906 = vld [vmem:[%s9 + $0x10] sm:$0xff]
  %v907 = vld [vmem:[%s9 + $0x18] sm:$0xff]
  %v908 = vld [vmem:[%s9 + $0x20] sm:$0xff]
  %v909 = vld [vmem:[%s9 + $0x28] sm:$0xff]
  %v910 = vld [vmem:[%s9 + $0x30] sm:$0xff]
  %v911 = vld [vmem:[%s9 + $0x38] sm:$0xff]
  %913 = vset.pattern.permute.xlu0 0
  %914 = vperm.xlu0 %913, %v904
  %v915 = vpop.permute.xlu0 %914
  %918 = vset.pattern.permute.xlu0 0
  %919 = vperm.xlu0 %918, %v905
  %v920 = vpop.permute.xlu0 %919
  %923 = vset.pattern.permute.xlu0 0
  %924 = vperm.xlu0 %923, %v906
  %v925 = vpop.permute.xlu0 %924
  %928 = vset.pattern.permute.xlu0 0
  %929 = vperm.xlu0 %928, %v907
  %v930 = vpop.permute.xlu0 %929
  %933 = vset.pattern.permute.xlu0 0
  %934 = vperm.xlu0 %933, %v908
  %v935 = vpop.permute.xlu0 %934
  %938 = vset.pattern.permute.xlu0 0
  %939 = vperm.xlu0 %938, %v909
  %v940 = vpop.permute.xlu0 %939
  %943 = vset.pattern.permute.xlu0 0
  %944 = vperm.xlu0 %943, %v910
  %v945 = vpop.permute.xlu0 %944
  %948 = vset.pattern.permute.xlu0 0
  %949 = vperm.xlu0 %948, %v911
  %v950 = vpop.permute.xlu0 %949
  %vm952 = vcmask 130048
  %v954 = vsel %vm952, %v896, 0
  %v957 = vsel %vm952, %v897, 0
  %v960 = vsel %vm952, %v898, 0
  %v963 = vsel %vm952, %v899, 0
  %v966 = vsel %vm952, %v900, 0
  %v969 = vsel %vm952, %v901, 0
  %v972 = vsel %vm952, %v902, 0
  %v975 = vsel %vm952, %v903, 0
  %977 = vmatprep.subr.mxu0 0.0
  %978 = vmatpush1.msra.mxu0 %v894
  %979 = vmatprep.subr.mxu0 0.0
  %980 = vmatpush1.msra.mxu0 %v895
  %981 = vmatprep.subr.mxu0 0.0
  %982 = vmatpush1.msra.mxu0 0.0
  %983 = vmatprep.subr.mxu0 0.0
  %984 = vmatpush1.msra.mxu0 0.0
  %985 = vmatprep.subr.mxu0 0.0
  %986 = vmatpush1.msra.mxu0 0.0
  %987 = vmatprep.subr.mxu0 0.0
  %988 = vmatpush1.msra.mxu0 0.0
  %989 = vmatprep.subr.mxu0 0.0
  %990 = vmatpush1.msra.mxu0 0.0
  %991 = vmatprep.subr.mxu0 0.0
  %992 = vmatpush1.msra.mxu0 0.0
  %993 = vmatprep.subr.mxu0 0.0
  %994 = vmatpush1.msra.mxu0 0.0
  %995 = vmatprep.subr.mxu0 0.0
  %996 = vmatpush1.msra.mxu0 0.0
  %997 = vmatprep.subr.mxu0 0.0
  %998 = vmatpush1.msra.mxu0 0.0
  %999 = vmatprep.subr.mxu0 0.0
  %1000 = vmatpush1.msra.mxu0 0.0
  %1001 = vmatprep.subr.mxu0 0.0
  %1002 = vmatpush1.msra.mxu0 0.0
  %1003 = vmatprep.subr.mxu0 0.0
  %1004 = vmatpush1.msra.mxu0 0.0
  %1005 = vmatprep.subr.mxu0 0.0
  %1006 = vmatpush1.msra.mxu0 0.0
  %1007 = vmatprep.subr.mxu0 0.0
  %1008 = vmatpush1.msra.mxu0 0.0
  %1009 = vmatprep.subr.mxu0 0.0
  %1010 = vmatpush1.msra.mxu0 0.0
  %1011 = vmatprep.subr.mxu0 0.0
  %1012 = vmatpush1.msra.mxu0 0.0
  %1013 = vmatprep.subr.mxu0 0.0
  %1014 = vmatpush1.msra.mxu0 0.0
  %1015 = vmatprep.subr.mxu0 0.0
  %1016 = vmatpush1.msra.mxu0 0.0
  %1017 = vmatprep.subr.mxu0 0.0
  %1018 = vmatpush1.msra.mxu0 0.0
  %1019 = vmatprep.subr.mxu0 0.0
  %1020 = vmatpush1.msra.mxu0 0.0
  %1021 = vmatprep.subr.mxu0 0.0
  %1022 = vmatpush1.msra.mxu0 0.0
  %1023 = vmatprep.subr.mxu0 0.0
  %1024 = vmatpush1.msra.mxu0 0.0
  %1025 = vmatprep.subr.mxu0 0.0
  %1026 = vmatpush1.msra.mxu0 0.0
  %1027 = vmatprep.subr.mxu0 0.0
  %1028 = vmatpush1.msra.mxu0 0.0
  %1029 = vmatprep.subr.mxu0 0.0
  %1030 = vmatpush1.msra.mxu0 0.0
  %1031 = vmatprep.subr.mxu0 0.0
  %1032 = vmatpush1.msra.mxu0 0.0
  %1033 = vmatprep.subr.mxu0 0.0
  %1034 = vmatpush1.msra.mxu0 0.0
  %1035 = vmatprep.subr.mxu0 0.0
  %1036 = vmatpush1.msra.mxu0 0.0
  %1037 = vmatprep.subr.mxu0 0.0
  %1038 = vmatpush1.msra.mxu0 0.0
  %1039 = vmatprep.subr.mxu0 0.0
  %1040 = vmatpush1.msra.mxu0 0.0
  %1041 = vmatprep.mubr.f32.mxu0 0.0
  %1042 = vmatmul.mubr.f32.gmra.mrb[0].mxu0 %v954
  %v1043 = vpop.f32.mrb[0].mxu0
  %v1044 = vadd.f32 %v915, %v1043
  %v1045 = vpop.f32.mrb[0].mxu0
  %1046 = vmatprep.mubr.f32.mxu0 0.0
  %1047 = vmatmul.mubr.f32.gmra.mrb[0].mxu0 %v957
  %v1048 = vpop.f32.mrb[0].mxu0
  %v1049 = vadd.f32 %v920, %v1048
  %v1050 = vpop.f32.mrb[0].mxu0
  %1051 = vmatprep.mubr.f32.mxu0 0.0
  %1052 = vmatmul.mubr.f32.gmra.mrb[0].mxu0 %v960
  %v1053 = vpop.f32.mrb[0].mxu0
  %v1054 = vadd.f32 %v925, %v1053
  %v1055 = vpop.f32.mrb[0].mxu0
  %1056 = vmatprep.mubr.f32.mxu0 0.0
  %1057 = vmatmul.mubr.f32.gmra.mrb[0].mxu0 %v963
  %v1058 = vpop.f32.mrb[0].mxu0
  %v1059 = vadd.f32 %v930, %v1058
  %v1060 = vpop.f32.mrb[0].mxu0
  %1061 = vmatprep.mubr.f32.mxu0 0.0
  %1062 = vmatmul.mubr.f32.gmra.mrb[0].mxu0 %v966
  %v1063 = vpop.f32.mrb[0].mxu0
  %v1064 = vadd.f32 %v935, %v1063
  %v1065 = vpop.f32.mrb[0].mxu0
  %1066 = vmatprep.mubr.f32.mxu0 0.0
  %1067 = vmatmul.mubr.f32.gmra.mrb[0].mxu0 %v969
  %v1068 = vpop.f32.mrb[0].mxu0
  %v1069 = vadd.f32 %v940, %v1068
  %v1070 = vpop.f32.mrb[0].mxu0
  %1071 = vmatprep.mubr.f32.mxu0 0.0
  %1072 = vmatmul.mubr.f32.gmra.mrb[0].mxu0 %v972
  %v1073 = vpop.f32.mrb[0].mxu0
  %v1074 = vadd.f32 %v945, %v1073
  %v1075 = vpop.f32.mrb[0].mxu0
  %1076 = vmatprep.mubr.f32.mxu0 0.0
  %1077 = vmatmul.mubr.f32.gmra.mrb[0].mxu0 %v975
  %v1078 = vpop.f32.mrb[0].mxu0
  %v1079 = vadd.f32 %v950, %v1078
  %v1080 = vpop.f32.mrb[0].mxu0
  %1081 = vdwg.mxu0
  %v1082 = vmax.f32 %v1044, 0.0
  %v1083 = vmax.f32 %v1049, 0.0
  %v1084 = vmax.f32 %v1054, 0.0
  %v1085 = vmax.f32 %v1059, 0.0
  %v1086 = vmax.f32 %v1064, 0.0
  %v1087 = vmax.f32 %v1069, 0.0
  %v1088 = vmax.f32 %v1074, 0.0
  %v1089 = vmax.f32 %v1079, 0.0
  %v1090 = vld [vmem:[%s10] sm:$0xff]
  %v1091 = vld [vmem:[%s10 + $0x8] sm:$0xff]
  %vm1092 = vcmask 523264
  %v1094 = vsel %vm1092, %v1090, 0
  %v1097 = vsel %vm1092, %v1091, 0
  %1099 = vmatprep.subr.mxu0 0.0
  %1100 = vmatpush1.msra.mxu0 %v1082
  %1101 = vmatprep.subr.mxu0 0.0
  %1102 = vmatpush1.msra.mxu0 %v1083
  %1103 = vmatprep.subr.mxu0 0.0
  %1104 = vmatpush1.msra.mxu0 %v1084
  %1105 = vmatprep.subr.mxu0 0.0
  %1106 = vmatpush1.msra.mxu0 %v1085
  %1107 = vmatprep.subr.mxu0 0.0
  %1108 = vmatpush1.msra.mxu0 %v1086
  %1109 = vmatprep.subr.mxu0 0.0
  %1110 = vmatpush1.msra.mxu0 %v1087
  %1111 = vmatprep.subr.mxu0 0.0
  %1112 = vmatpush1.msra.mxu0 %v1088
  %1113 = vmatprep.subr.mxu0 0.0
  %1114 = vmatpush1.msra.mxu0 %v1089
  %1115 = vmatprep.subr.mxu0 0.0
  %1116 = vmatpush1.msra.mxu0 0.0
  %1117 = vmatprep.subr.mxu0 0.0
  %1118 = vmatpush1.msra.mxu0 0.0
  %1119 = vmatprep.subr.mxu0 0.0
  %1120 = vmatpush1.msra.mxu0 0.0
  %1121 = vmatprep.subr.mxu0 0.0
  %1122 = vmatpush1.msra.mxu0 0.0
  %1123 = vmatprep.subr.mxu0 0.0
  %1124 = vmatpush1.msra.mxu0 0.0
  %1125 = vmatprep.subr.mxu0 0.0
  %1126 = vmatpush1.msra.mxu0 0.0
  %1127 = vmatprep.subr.mxu0 0.0
  %1128 = vmatpush1.msra.mxu0 0.0
  %1129 = vmatprep.subr.mxu0 0.0
  %1130 = vmatpush1.msra.mxu0 0.0
  %1131 = vmatprep.subr.mxu0 0.0
  %1132 = vmatpush1.msra.mxu0 0.0
  %1133 = vmatprep.subr.mxu0 0.0
  %1134 = vmatpush1.msra.mxu0 0.0
  %1135 = vmatprep.subr.mxu0 0.0
  %1136 = vmatpush1.msra.mxu0 0.0
  %1137 = vmatprep.subr.mxu0 0.0
  %1138 = vmatpush1.msra.mxu0 0.0
  %1139 = vmatprep.subr.mxu0 0.0
  %1140 = vmatpush1.msra.mxu0 0.0
  %1141 = vmatprep.subr.mxu0 0.0
  %1142 = vmatpush1.msra.mxu0 0.0
  %1143 = vmatprep.subr.mxu0 0.0
  %1144 = vmatpush1.msra.mxu0 0.0
  %1145 = vmatprep.subr.mxu0 0.0
  %1146 = vmatpush1.msra.mxu0 0.0
  %1147 = vmatprep.subr.mxu0 0.0
  %1148 = vmatpush1.msra.mxu0 0.0
  %1149 = vmatprep.subr.mxu0 0.0
  %1150 = vmatpush1.msra.mxu0 0.0
  %1151 = vmatprep.subr.mxu0 0.0
  %1152 = vmatpush1.msra.mxu0 0.0
  %1153 = vmatprep.subr.mxu0 0.0
  %1154 = vmatpush1.msra.mxu0 0.0
  %1155 = vmatprep.subr.mxu0 0.0
  %1156 = vmatpush1.msra.mxu0 0.0
  %1157 = vmatprep.subr.mxu0 0.0
  %1158 = vmatpush1.msra.mxu0 0.0
  %1159 = vmatprep.subr.mxu0 0.0
  %1160 = vmatpush1.msra.mxu0 0.0
  %1161 = vmatprep.subr.mxu0 0.0
  %1162 = vmatpush1.msra.mxu0 0.0
  %1163 = vmatprep.mubr.f32.mxu0 0.0
  %1164 = vmatmul.mubr.f32.gmra.mrb[0].mxu0 %v1094
  %v1165 = vpop.f32.mrb[0].mxu0
  %v1166 = vadd.f32 0.0, %v1165
  %v1167 = vpop.f32.mrb[0].mxu0
  %1168 = vmatprep.mubr.f32.mxu0 0.0
  %1169 = vmatmul.mubr.f32.gmra.mrb[0].mxu0 %v1097
  %v1170 = vpop.f32.mrb[0].mxu0
  %v1171 = vadd.f32 0.0, %v1170
  %v1172 = vpop.f32.mrb[0].mxu0
  %1173 = vdwg.mxu0
  %v1174 = vld [vmem:[%s11] sm:$0x1]
  %v1176 = vlaneseq
  %v1177 = vshrl.u32 %v1176, 7
  %v1178 = vsub.s32 0, %v1177
  %v1179 = vrot.slane %v1174, %v1178
  %v1181 = vmul.f32 %v1166, %v1179
  %v1182 = vmul.f32 %v1171, %v1179
  %1185 = vrot.lane.b32.xlu0 %v821, 64
  %v1186 = vpop.permute.xlu0 %1185
  %1187 = vrot.lane.b32.xlu0 %v824, 64
  %v1188 = vpop.permute.xlu0 %1187
  %v1189 = vsel %vm138, %v1186, 0
  %v1191 = vsel %vm138, %v1188, 0
  %1193 = vmatprep.subr.mxu0 0.0
  %1194 = vmatpush1.msra.mxu0 %v825
  %1195 = vmatprep.subr.mxu0 0.0
  %1196 = vmatpush1.msra.mxu0 %v826
  %1197 = vmatprep.subr.mxu0 0.0
  %1198 = vmatpush1.msra.mxu0 %v827
  %1199 = vmatprep.subr.mxu0 0.0
  %1200 = vmatpush1.msra.mxu0 %v828
  %1201 = vmatprep.subr.mxu0 0.0
  %1202 = vmatpush1.msra.mxu0 0.0
  %1203 = vmatprep.subr.mxu0 0.0
  %1204 = vmatpush1.msra.mxu0 0.0
  %1205 = vmatprep.subr.mxu0 0.0
  %1206 = vmatpush1.msra.mxu0 0.0
  %1207 = vmatprep.subr.mxu0 0.0
  %1208 = vmatpush1.msra.mxu0 0.0
  %1209 = vmatprep.subr.mxu0 0.0
  %1210 = vmatpush1.msra.mxu0 0.0
  %1211 = vmatprep.subr.mxu0 0.0
  %1212 = vmatpush1.msra.mxu0 0.0
  %1213 = vmatprep.subr.mxu0 0.0
  %1214 = vmatpush1.msra.mxu0 0.0
  %1215 = vmatprep.subr.mxu0 0.0
  %1216 = vmatpush1.msra.mxu0 0.0
  %1217 = vmatprep.subr.mxu0 0.0
  %1218 = vmatpush1.msra.mxu0 0.0
  %1219 = vmatprep.subr.mxu0 0.0
  %1220 = vmatpush1.msra.mxu0 0.0
  %1221 = vmatprep.subr.mxu0 0.0
  %1222 = vmatpush1.msra.mxu0 0.0
  %1223 = vmatprep.subr.mxu0 0.0
  %1224 = vmatpush1.msra.mxu0 0.0
  %1225 = vmatprep.subr.mxu0 0.0
  %1226 = vmatpush1.msra.mxu0 0.0
  %1227 = vmatprep.subr.mxu0 0.0
  %1228 = vmatpush1.msra.mxu0 0.0
  %1229 = vmatprep.subr.mxu0 0.0
  %1230 = vmatpush1.msra.mxu0 0.0
  %1231 = vmatprep.subr.mxu0 0.0
  %1232 = vmatpush1.msra.mxu0 0.0
  %1233 = vmatprep.subr.mxu0 0.0
  %1234 = vmatpush1.msra.mxu0 0.0
  %1235 = vmatprep.subr.mxu0 0.0
  %1236 = vmatpush1.msra.mxu0 0.0
  %1237 = vmatprep.subr.mxu0 0.0
  %1238 = vmatpush1.msra.mxu0 0.0
  %1239 = vmatprep.subr.mxu0 0.0
  %1240 = vmatpush1.msra.mxu0 0.0
  %1241 = vmatprep.subr.mxu0 0.0
  %1242 = vmatpush1.msra.mxu0 0.0
  %1243 = vmatprep.subr.mxu0 0.0
  %1244 = vmatpush1.msra.mxu0 0.0
  %1245 = vmatprep.subr.mxu0 0.0
  %1246 = vmatpush1.msra.mxu0 0.0
  %1247 = vmatprep.subr.mxu0 0.0
  %1248 = vmatpush1.msra.mxu0 0.0
  %1249 = vmatprep.subr.mxu0 0.0
  %1250 = vmatpush1.msra.mxu0 0.0
  %1251 = vmatprep.subr.mxu0 0.0
  %1252 = vmatpush1.msra.mxu0 0.0
  %1253 = vmatprep.subr.mxu0 0.0
  %1254 = vmatpush1.msra.mxu0 0.0
  %1255 = vmatprep.subr.mxu0 0.0
  %1256 = vmatpush1.msra.mxu0 0.0
  %1257 = vmatprep.mubr.f32.mxu0 0.0
  %1258 = vmatmul.mubr.f32.gmra.mrb[0].mxu0 %v1189
  %v1259 = vpop.f32.mrb[0].mxu0
  %v1260 = vadd.f32 %v1181, %v1259
  %v1261 = vpop.f32.mrb[0].mxu0
  %1262 = vmatprep.mubr.f32.mxu0 0.0
  %1263 = vmatmul.mubr.f32.gmra.mrb[0].mxu0 %v1191
  %v1264 = vpop.f32.mrb[0].mxu0
  %v1265 = vadd.f32 %v1182, %v1264
  %v1266 = vpop.f32.mrb[0].mxu0
  %1267 = vdwg.mxu0
  %v1268 = vld [vmem:[%s12] sm:$0xff]
  %v1269 = vld [vmem:[%s12 + $0x8] sm:$0xff]
  %v1270 = vadd.f32 %v1260, %v1268
  %v1271 = vadd.f32 %v1265, %v1269
  %vm1272 = vcmask 31744
  %1273 = vst.msk [vmem:[%s13] sm:$0xff] %vm1272, %v1270
  %1274 = vst.msk [vmem:[%s13 + $0x8] sm:$0xff] %vm1272, %v1271
  // Predicated region
  $region54: #{tpu_custom_call.1} parent=0 // pred_check
    _
  $region55: #{tpu_custom_call.1} parent=0 // pred_check_branch
    %1276 = sbr.rel (0) target = $region57
  $region56: #{tpu_custom_call.1} parent=0 // pred_region
    _
  $region57: #{tpu_custom_call.1} parent=0 // pred_fallthru
    _
  // Predicated region
  $region58: #{tpu_custom_call.1} parent=0 // pred_check
    _
  $region59: #{tpu_custom_call.1} parent=0 // pred_check_branch
    %1278 = sbr.rel (0) target = $region61
  $region60: #{tpu_custom_call.1} parent=0 // pred_region
    _
  $region61: #{tpu_custom_call.1} parent=0 // pred_fallthru
    _

</llo_original>
